<compile_context>
chip_gen: v5e
topology: v5e:2x2
jax: 0.10.0
libtpu: 0.0.40
codegen_flags: <defaults>
</compile_context>

<pallas_src>
import jax
import jax.numpy as jnp
from jax import lax
from jax.experimental import pallas as pl
from jax.experimental.pallas import tpu as pltpu


def _round_up(x, m):
    return (x + m - 1) // m * m


def _sigmoid(x):
    # sigmoid(x) == 0.5 * (tanh(x / 2) + 1): a single EUP op.
    return 0.5 * (jnp.tanh(0.5 * x) + 1.0)


def _pick_bblk(B):
    """Images per grid step: fold batch, but keep >=2 steps for v7x's 2 TCs."""
    if B <= 2:
        return 1
    for bb in range(B // 2, 0, -1):
        if B % bb == 0:
            return bb
    return 1


def _make_encoder_kernel(Cinp, Cout, Ho, Wo, Bblk):
    """Fused kernel + static layout constants.

    Flat spatial layout: every output row is stored with a pitch of Wq = Wo + 2
    columns (Wo valid + 2 pad), so any conv tap at offset (a, b) is a plain
    contiguous lane-slice at flat offset a*Wq + b.
    """
    KH, KG = 5, 3                                # conv kernel sizes
    Wq = Wo + 2                                  # flat row pitch
    M1 = Ho * Wq                                 # valid flat extent (junk cols masked)
    M2 = _round_up(M1, 128)                      # lane-dense output width
    MS = _round_up(M1 + Wq + 1, 128)             # stage-1 width (covers bottom pad row)
    SHIFT = Wq + 1                               # h1 interior offset in padded buffer
    L1 = _round_up(2 * Wq + 2 + MS, 128)         # xf phase-slab lane length
    L2 = _round_up(max(2 * Wq + 2 + M2, SHIFT + MS), 128)   # padded flat h1 length
    K1 = KH * KH * Cinp                          # stage-1 packed weight lanes
    K2 = KG * KG * Cout                          # stage-2 packed weight lanes
    C3 = 3 * Cout                                # in/out/cell gate rows (forget dropped)

    # stride-2 conv taps -> (parity phase index, flat offset inside that phase slab)
    taps1 = [((kh % 2) * 2 + (kw % 2), (kh // 2) * Wq + (kw // 2))
             for kh in range(KH) for kw in range(KH)]
    # 3x3 gate-conv taps -> flat offsets inside the zero-padded h1 buffer
    taps2 = [a * Wq + b for a in range(KG) for b in range(KG)]

    def kernel(xf_ref, w1_ref, b1_ref, mask_ref, w2_ref, b2_ref,
               yh_ref, yc_ref, h1p_ref):
        for j in range(Bblk):
            # ---- stage 1: Conv2d(Cin->Cout, 5x5, stride 2, pad 2) ----
            # 25 per-tap bf16 MXU matmuls accumulated in f32; no im2col scratch.
            acc1 = None
            for t, (p, off) in enumerate(taps1):
                part = jnp.dot(w1_ref[:, t * Cinp:(t + 1) * Cinp],
                               xf_ref[j, p, :, off:off + MS],
                               preferred_element_type=jnp.float32)
                acc1 = part if acc1 is None else acc1 + part
            # mask zeroes the junk columns of the pitch-Wq layout AND the
            # [M1, MS) tail, which doubles as the bottom pad row of h1p.
            h1 = (acc1 + b1_ref[...]) * mask_ref[...]

            # ---- hand h1 to the gate conv entirely in VMEM (bf16 slab) ----
            h1p_ref[:, 0:SHIFT] = jnp.zeros((Cout, SHIFT), h1p_ref.dtype)
            h1p_ref[:, SHIFT:SHIFT + MS] = h1.astype(h1p_ref.dtype)
            # [SHIFT+MS, L2) is never zeroed on purpose: lanes there only feed
            # output columns >= M1, which the wrapper slices away.

            # ---- stage 2: ConvLSTM gates (3x3, pad 1) + cell update ----
            # z_prev is None: hidden half of the gate-conv input is zero and the
            # forget gate multiplies a zero cell state, so only 3*Cout gate rows
            # and 9*Cout input lanes participate.
            acc2 = None
            for t, off in enumerate(taps2):
                part = jnp.dot(w2_ref[:, t * Cout:(t + 1) * Cout],
                               h1p_ref[:, off:off + M2],
                               preferred_element_type=jnp.float32)
                acc2 = part if acc2 is None else acc2 + part
            gates = acc2 + b2_ref[...]

            g_in = _sigmoid(gates[0 * Cout:1 * Cout])
            g_out = _sigmoid(gates[1 * Cout:2 * Cout])
            g_cell = jnp.tanh(gates[2 * Cout:3 * Cout])
            y_cell = g_in * g_cell
            y_hidden = g_out * jnp.tanh(y_cell)
            yc_ref[j] = y_cell.astype(yc_ref.dtype)
            yh_ref[j] = y_hidden.astype(yh_ref.dtype)

    dims = dict(Wq=Wq, M1=M1, M2=M2, MS=MS, L1=L1, L2=L2, K1=K1, K2=K2, C3=C3)
    return kernel, dims


@jax.jit
def encoder_layer_forward(x_nchw, params):
    """EncoderLayer.forward(x, z_prev=None) -> (y, (y_hidden, y_cell)); NCHW in/out."""
    # TODO(synk): kernel specializes the z_prev=None path (zero initial LSTM state)
    # used by EncoderLayer; a non-None z_prev needs the full 2C-input gate conv,
    # the forget-gate rows and the forget_gate*cell term.
    B, Cin, H, W = x_nchw.shape
    conv_w, conv_b = params["conv_w"], params["conv_b"]
    gates_w, gates_b = params["gates_w"], params["gates_b"]
    KH, KG = conv_w.shape[0], gates_w.shape[0]
    Cout = conv_w.shape[3]
    assert KH == 5 and KG == 3, "kernel is specialized for 5x5/s2 + 3x3 convs"
    assert Cout % 8 == 0, "kernel assumes sublane-aligned output channels"
    pad = KH // 2
    Ho = (H + 2 * pad - KH) // 2 + 1
    Wo = (W + 2 * pad - KH) // 2 + 1
    Cinp = _round_up(Cin, 8)              # pad input channels to a sublane multiple
    Bblk = _pick_bblk(B)
    G = B // Bblk

    kernel, d = _make_encoder_kernel(Cinp, Cout, Ho, Wo, Bblk)
    Wq, M1, M2, MS = d["Wq"], d["M1"], d["M2"], d["MS"]
    L1, K1, K2, C3 = d["L1"], d["K1"], d["K2"], d["C3"]
    L2 = d["L2"]
    Hq = Ho + 2

    # --- space-to-depth in bf16: one pad covers channel pad + spatial halo ---
    x_bf = x_nchw.astype(jnp.bfloat16)
    xp = jnp.pad(x_bf, ((0, 0), (0, Cinp - Cin),
                        (pad, 2 * Hq - H - pad), (pad, 2 * Wq - W - pad)))
    phases = [xp[:, :, pi::2, pj::2] for pi in range(2) for pj in range(2)]
    xf = jnp.stack(phases, axis=1).reshape(B, 4, Cinp, Hq * Wq)
    xf = jnp.pad(xf, ((0, 0), (0, 0), (0, 0), (0, L1 - Hq * Wq)))

    # --- weights: per-tap (rows_out, channels_in) blocks packed along lanes, bf16 ---
    w1 = jnp.transpose(conv_w, (3, 0, 1, 2)).reshape(Cout, KH * KH, Cin)
    w1 = jnp.pad(w1, ((0, 0), (0, 0), (0, Cinp - Cin)))
    w1 = w1.reshape(Cout, K1).astype(jnp.bfloat16)
    b1 = conv_b.reshape(Cout, 1).astype(jnp.float32)

    # zero hidden state -> drop hidden half of the gate-conv input; zero cell
    # state -> drop the forget-gate output rows entirely.
    gw = jnp.concatenate([gates_w[:, :, :Cout, 0:Cout],
                          gates_w[:, :, :Cout, 2 * Cout:4 * Cout]], axis=3)
    w2 = jnp.transpose(gw, (3, 0, 1, 2)).reshape(C3, K2).astype(jnp.bfloat16)
    b2 = jnp.concatenate([gates_b[0:Cout], gates_b[2 * Cout:4 * Cout]])
    b2 = b2.reshape(C3, 1).astype(jnp.float32)

    # mask: zero junk columns of the pitch-Wq layout and the [M1, MS) lane tail
    cols = jnp.arange(MS)
    mask1 = (((cols % Wq) < Wo) & (cols < M1)).astype(jnp.float32).reshape(1, MS)

    yh_p, yc_p = pl.pallas_call(
        kernel,
        out_shape=(jax.ShapeDtypeStruct((B, Cout, M2), jnp.float32),
                   jax.ShapeDtypeStruct((B, Cout, M2), jnp.float32)),
        grid=(G,),
        in_specs=[
            pl.BlockSpec((Bblk, 4, Cinp, L1), lambda b: (b, 0, 0, 0)),
            pl.BlockSpec((Cout, K1), lambda b: (0, 0)),
            pl.BlockSpec((Cout, 1), lambda b: (0, 0)),
            pl.BlockSpec((1, MS), lambda b: (0, 0)),
            pl.BlockSpec((C3, K2), lambda b: (0, 0)),
            pl.BlockSpec((C3, 1), lambda b: (0, 0)),
        ],
        out_specs=(
            pl.BlockSpec((Bblk, Cout, M2), lambda b: (b, 0, 0)),
            pl.BlockSpec((Bblk, Cout, M2), lambda b: (b, 0, 0)),
        ),
        scratch_shapes=[
            pltpu.VMEM((Cout, L2), jnp.bfloat16),   # zero-padded flat h1, stays on chip
        ],
        compiler_params=pltpu.CompilerParams(
            dimension_semantics=("parallel",),
            vmem_limit_bytes=32 * 1024 * 1024),
    )(xf, w1, b1, mask1, w2, b2)

    # drop the junk columns of the flat padded-width layout -> NCHW outputs
    yh = yh_p[:, :, :M1].reshape(B, Cout, Ho, Wq)[:, :, :, :Wo]
    yc = yc_p[:, :, :M1].reshape(B, Cout, Ho, Wq)[:, :, :, :Wo]
    return yh, (yh, yc)


# ----------------------------------------------------------------------------
# Pure-JAX reference (for verification)
# ----------------------------------------------------------------------------
def _ref_forward(x_nchw, params):
    dn = ("NHWC", "HWIO", "NHWC")
    x = jnp.transpose(x_nchw, (0, 2, 3, 1))
    h1 = lax.conv_general_dilated(x, params["conv_w"], (2, 2), ((2, 2), (2, 2)),
                                  dimension_numbers=dn) + params["conv_b"]
    B, Ho, Wo, C = h1.shape
    hidden0 = jnp.zeros((B, Ho, Wo, C), jnp.float32)
    cell0 = jnp.zeros((B, Ho, Wo, C), jnp.float32)
    cat = jnp.concatenate([h1, hidden0], axis=-1)
    gates = lax.conv_general_dilated(cat, params["gates_w"], (1, 1), ((1, 1), (1, 1)),
                                     dimension_numbers=dn) + params["gates_b"]
    gi = jax.nn.sigmoid(gates[..., 0 * C:1 * C])
    gf = jax.nn.sigmoid(gates[..., 1 * C:2 * C])
    go = jax.nn.sigmoid(gates[..., 2 * C:3 * C])
    gc = jnp.tanh(gates[..., 3 * C:4 * C])
    yc = gf * cell0 + gi * gc
    yh = go * jnp.tanh(yc)
    return jnp.transpose(yh, (0, 3, 1, 2)), jnp.transpose(yc, (0, 3, 1, 2))


# ----------------------------------------------------------------------------
if __name__ == "__main__":
    B, in_chn, out_chn, H, W = 2, 4, 8, 16, 16

    key = jax.random.PRNGKey(0)
    k1, k2, k3, k4, k5 = jax.random.split(key, 5)

    # Deterministic synthetic parameters (HWIO weight layout).
    params = {
        "conv_w": 0.1 * jax.random.normal(k1, (5, 5, in_chn, out_chn), jnp.float32),
        "conv_b": 0.1 * jax.random.normal(k2, (out_chn,), jnp.float32),
        "gates_w": 0.1 * jax.random.normal(
            k3, (3, 3, out_chn + out_chn, 4 * out_chn), jnp.float32),
        "gates_b": 0.1 * jax.random.normal(k4, (4 * out_chn,), jnp.float32),
    }

    x = jax.random.normal(k5, (B, in_chn, H, W), jnp.float32)     # NCHW input

    y, (y_hidden, y_cell) = encoder_layer_forward(x, params)
    jax.block_until_ready((y, y_hidden, y_cell))

    ref_h, ref_c = _ref_forward(x, params)
    assert y.shape == (B, out_chn, H // 2, W // 2)
    # bf16 MXU operands (f32 accumulation) -> loosened tolerance vs. the f32 reference
    assert jnp.allclose(y_hidden, ref_h, atol=5e-2, rtol=5e-2)
    assert jnp.allclose(y_cell, ref_c, atol=5e-2, rtol=5e-2)

    print("KERNEL_OK")
</pallas_src>

<mosaic_0001>
module attributes {stable_mosaic.version = 11 : i64} {
  func.func @kernel(%arg0: i32, %arg1: memref<1x4x8x256xbf16, #tpu.memory_space<vmem>>, %arg2: memref<8x200xbf16, #tpu.memory_space<vmem>>, %arg3: memref<8x1xf32, #tpu.memory_space<vmem>>, %arg4: memref<1x128xf32, #tpu.memory_space<vmem>>, %arg5: memref<24x72xbf16, #tpu.memory_space<vmem>>, %arg6: memref<24x1xf32, #tpu.memory_space<vmem>>, %arg7: memref<1x8x128xf32, #tpu.memory_space<vmem>>, %arg8: memref<1x8x128xf32, #tpu.memory_space<vmem>>, %arg9: memref<8x256xbf16, #tpu.memory_space<vmem>>) attributes {dimension_semantics = [#tpu.dimension_semantics<parallel>], iteration_bounds = array<i64: 2>, scalar_prefetch = 0 : i64, scratch_operands = 1 : i64, tpu.core_type = #tpu.core_type<tc>, window_params = [{transform_indices = @transform_0, window_bounds = array<i64: 1, 4, 8, 256>}, {pipeline_mode = #tpu.pipeline_mode<synchronous>, transform_indices = @transform_1, window_bounds = array<i64: 8, 200>}, {pipeline_mode = #tpu.pipeline_mode<synchronous>, transform_indices = @transform_2, window_bounds = array<i64: 8, 1>}, {pipeline_mode = #tpu.pipeline_mode<synchronous>, transform_indices = @transform_3, window_bounds = array<i64: 1, 128>}, {pipeline_mode = #tpu.pipeline_mode<synchronous>, transform_indices = @transform_4, window_bounds = array<i64: 24, 72>}, {pipeline_mode = #tpu.pipeline_mode<synchronous>, transform_indices = @transform_5, window_bounds = array<i64: 24, 1>}, {transform_indices = @transform_6, window_bounds = array<i64: 1, 8, 128>}, {transform_indices = @transform_7, window_bounds = array<i64: 1, 8, 128>}]} {
    %c0 = arith.constant 0 : index
    %c0_0 = arith.constant 0 : index
    %0 = vector.load %arg2[%c0, %c0_0] : memref<8x200xbf16, #tpu.memory_space<vmem>>, vector<8x8xbf16>
    %c0_1 = arith.constant 0 : index
    %c0_2 = arith.constant 0 : index
    %c0_3 = arith.constant 0 : index
    %c0_4 = arith.constant 0 : index
    %1 = vector.load %arg1[%c0_1, %c0_2, %c0_3, %c0_4] : memref<1x4x8x256xbf16, #tpu.memory_space<vmem>>, vector<1x1x8x128xbf16>
    %2 = vector.shape_cast %1 : vector<1x1x8x128xbf16> to vector<8x128xbf16>
    %cst = arith.constant dense<0.000000e+00> : vector<8x128xf32>
    %3 = tpu.matmul %0, %2, %cst {dimension_numbers = #tpu.dot_dimension_numbers<[1], [0], [0], [1], [0, 0, 1, 1], [], []>} : vector<8x8xbf16>, vector<8x128xbf16>, vector<8x128xf32> -> vector<8x128xf32>
    %c0_5 = arith.constant 0 : index
    %c8 = arith.constant 8 : index
    %4 = vector.load %arg2[%c0_5, %c8] : memref<8x200xbf16, #tpu.memory_space<vmem>>, vector<8x8xbf16>
    %c0_6 = arith.constant 0 : index
    %c1 = arith.constant 1 : index
    %c0_7 = arith.constant 0 : index
    %c0_8 = arith.constant 0 : index
    %5 = vector.load %arg1[%c0_6, %c1, %c0_7, %c0_8] : memref<1x4x8x256xbf16, #tpu.memory_space<vmem>>, vector<1x1x8x128xbf16>
    %6 = vector.shape_cast %5 : vector<1x1x8x128xbf16> to vector<8x128xbf16>
    %cst_9 = arith.constant dense<0.000000e+00> : vector<8x128xf32>
    %7 = tpu.matmul %4, %6, %cst_9 {dimension_numbers = #tpu.dot_dimension_numbers<[1], [0], [0], [1], [0, 0, 1, 1], [], []>} : vector<8x8xbf16>, vector<8x128xbf16>, vector<8x128xf32> -> vector<8x128xf32>
    %8 = arith.addf %3, %7 : vector<8x128xf32>
    %c0_10 = arith.constant 0 : index
    %c16 = arith.constant 16 : index
    %9 = vector.load %arg2[%c0_10, %c16] : memref<8x200xbf16, #tpu.memory_space<vmem>>, vector<8x8xbf16>
    %c0_11 = arith.constant 0 : index
    %c0_12 = arith.constant 0 : index
    %c0_13 = arith.constant 0 : index
    %c1_14 = arith.constant 1 : index
    %10 = vector.load %arg1[%c0_11, %c0_12, %c0_13, %c1_14] : memref<1x4x8x256xbf16, #tpu.memory_space<vmem>>, vector<1x1x8x128xbf16>
    %11 = vector.shape_cast %10 : vector<1x1x8x128xbf16> to vector<8x128xbf16>
    %cst_15 = arith.constant dense<0.000000e+00> : vector<8x128xf32>
    %12 = tpu.matmul %9, %11, %cst_15 {dimension_numbers = #tpu.dot_dimension_numbers<[1], [0], [0], [1], [0, 0, 1, 1], [], []>} : vector<8x8xbf16>, vector<8x128xbf16>, vector<8x128xf32> -> vector<8x128xf32>
    %13 = arith.addf %8, %12 : vector<8x128xf32>
    %c0_16 = arith.constant 0 : index
    %c24 = arith.constant 24 : index
    %14 = vector.load %arg2[%c0_16, %c24] : memref<8x200xbf16, #tpu.memory_space<vmem>>, vector<8x8xbf16>
    %c0_17 = arith.constant 0 : index
    %c1_18 = arith.constant 1 : index
    %c0_19 = arith.constant 0 : index
    %c1_20 = arith.constant 1 : index
    %15 = vector.load %arg1[%c0_17, %c1_18, %c0_19, %c1_20] : memref<1x4x8x256xbf16, #tpu.memory_space<vmem>>, vector<1x1x8x128xbf16>
    %16 = vector.shape_cast %15 : vector<1x1x8x128xbf16> to vector<8x128xbf16>
    %cst_21 = arith.constant dense<0.000000e+00> : vector<8x128xf32>
    %17 = tpu.matmul %14, %16, %cst_21 {dimension_numbers = #tpu.dot_dimension_numbers<[1], [0], [0], [1], [0, 0, 1, 1], [], []>} : vector<8x8xbf16>, vector<8x128xbf16>, vector<8x128xf32> -> vector<8x128xf32>
    %18 = arith.addf %13, %17 : vector<8x128xf32>
    %c0_22 = arith.constant 0 : index
    %c32 = arith.constant 32 : index
    %19 = vector.load %arg2[%c0_22, %c32] : memref<8x200xbf16, #tpu.memory_space<vmem>>, vector<8x8xbf16>
    %c0_23 = arith.constant 0 : index
    %c0_24 = arith.constant 0 : index
    %c0_25 = arith.constant 0 : index
    %c2 = arith.constant 2 : index
    %20 = vector.load %arg1[%c0_23, %c0_24, %c0_25, %c2] : memref<1x4x8x256xbf16, #tpu.memory_space<vmem>>, vector<1x1x8x128xbf16>
    %21 = vector.shape_cast %20 : vector<1x1x8x128xbf16> to vector<8x128xbf16>
    %cst_26 = arith.constant dense<0.000000e+00> : vector<8x128xf32>
    %22 = tpu.matmul %19, %21, %cst_26 {dimension_numbers = #tpu.dot_dimension_numbers<[1], [0], [0], [1], [0, 0, 1, 1], [], []>} : vector<8x8xbf16>, vector<8x128xbf16>, vector<8x128xf32> -> vector<8x128xf32>
    %23 = arith.addf %18, %22 : vector<8x128xf32>
    %c0_27 = arith.constant 0 : index
    %c40 = arith.constant 40 : index
    %24 = vector.load %arg2[%c0_27, %c40] : memref<8x200xbf16, #tpu.memory_space<vmem>>, vector<8x8xbf16>
    %c0_28 = arith.constant 0 : index
    %c2_29 = arith.constant 2 : index
    %c0_30 = arith.constant 0 : index
    %c0_31 = arith.constant 0 : index
    %25 = vector.load %arg1[%c0_28, %c2_29, %c0_30, %c0_31] : memref<1x4x8x256xbf16, #tpu.memory_space<vmem>>, vector<1x1x8x128xbf16>
    %26 = vector.shape_cast %25 : vector<1x1x8x128xbf16> to vector<8x128xbf16>
    %cst_32 = arith.constant dense<0.000000e+00> : vector<8x128xf32>
    %27 = tpu.matmul %24, %26, %cst_32 {dimension_numbers = #tpu.dot_dimension_numbers<[1], [0], [0], [1], [0, 0, 1, 1], [], []>} : vector<8x8xbf16>, vector<8x128xbf16>, vector<8x128xf32> -> vector<8x128xf32>
    %28 = arith.addf %23, %27 : vector<8x128xf32>
    %c0_33 = arith.constant 0 : index
    %c48 = arith.constant 48 : index
    %29 = vector.load %arg2[%c0_33, %c48] : memref<8x200xbf16, #tpu.memory_space<vmem>>, vector<8x8xbf16>
    %c0_34 = arith.constant 0 : index
    %c3 = arith.constant 3 : index
    %c0_35 = arith.constant 0 : index
    %c0_36 = arith.constant 0 : index
    %30 = vector.load %arg1[%c0_34, %c3, %c0_35, %c0_36] : memref<1x4x8x256xbf16, #tpu.memory_space<vmem>>, vector<1x1x8x128xbf16>
    %31 = vector.shape_cast %30 : vector<1x1x8x128xbf16> to vector<8x128xbf16>
    %cst_37 = arith.constant dense<0.000000e+00> : vector<8x128xf32>
    %32 = tpu.matmul %29, %31, %cst_37 {dimension_numbers = #tpu.dot_dimension_numbers<[1], [0], [0], [1], [0, 0, 1, 1], [], []>} : vector<8x8xbf16>, vector<8x128xbf16>, vector<8x128xf32> -> vector<8x128xf32>
    %33 = arith.addf %28, %32 : vector<8x128xf32>
    %c0_38 = arith.constant 0 : index
    %c56 = arith.constant 56 : index
    %34 = vector.load %arg2[%c0_38, %c56] : memref<8x200xbf16, #tpu.memory_space<vmem>>, vector<8x8xbf16>
    %c0_39 = arith.constant 0 : index
    %c2_40 = arith.constant 2 : index
    %c0_41 = arith.constant 0 : index
    %c1_42 = arith.constant 1 : index
    %35 = vector.load %arg1[%c0_39, %c2_40, %c0_41, %c1_42] : memref<1x4x8x256xbf16, #tpu.memory_space<vmem>>, vector<1x1x8x128xbf16>
    %36 = vector.shape_cast %35 : vector<1x1x8x128xbf16> to vector<8x128xbf16>
    %cst_43 = arith.constant dense<0.000000e+00> : vector<8x128xf32>
    %37 = tpu.matmul %34, %36, %cst_43 {dimension_numbers = #tpu.dot_dimension_numbers<[1], [0], [0], [1], [0, 0, 1, 1], [], []>} : vector<8x8xbf16>, vector<8x128xbf16>, vector<8x128xf32> -> vector<8x128xf32>
    %38 = arith.addf %33, %37 : vector<8x128xf32>
    %c0_44 = arith.constant 0 : index
    %c64 = arith.constant 64 : index
    %39 = vector.load %arg2[%c0_44, %c64] : memref<8x200xbf16, #tpu.memory_space<vmem>>, vector<8x8xbf16>
    %c0_45 = arith.constant 0 : index
    %c3_46 = arith.constant 3 : index
    %c0_47 = arith.constant 0 : index
    %c1_48 = arith.constant 1 : index
    %40 = vector.load %arg1[%c0_45, %c3_46, %c0_47, %c1_48] : memref<1x4x8x256xbf16, #tpu.memory_space<vmem>>, vector<1x1x8x128xbf16>
    %41 = vector.shape_cast %40 : vector<1x1x8x128xbf16> to vector<8x128xbf16>
    %cst_49 = arith.constant dense<0.000000e+00> : vector<8x128xf32>
    %42 = tpu.matmul %39, %41, %cst_49 {dimension_numbers = #tpu.dot_dimension_numbers<[1], [0], [0], [1], [0, 0, 1, 1], [], []>} : vector<8x8xbf16>, vector<8x128xbf16>, vector<8x128xf32> -> vector<8x128xf32>
    %43 = arith.addf %38, %42 : vector<8x128xf32>
    %c0_50 = arith.constant 0 : index
    %c72 = arith.constant 72 : index
    %44 = vector.load %arg2[%c0_50, %c72] : memref<8x200xbf16, #tpu.memory_space<vmem>>, vector<8x8xbf16>
    %c0_51 = arith.constant 0 : index
    %c2_52 = arith.constant 2 : index
    %c0_53 = arith.constant 0 : index
    %c2_54 = arith.constant 2 : index
    %45 = vector.load %arg1[%c0_51, %c2_52, %c0_53, %c2_54] : memref<1x4x8x256xbf16, #tpu.memory_space<vmem>>, vector<1x1x8x128xbf16>
    %46 = vector.shape_cast %45 : vector<1x1x8x128xbf16> to vector<8x128xbf16>
    %cst_55 = arith.constant dense<0.000000e+00> : vector<8x128xf32>
    %47 = tpu.matmul %44, %46, %cst_55 {dimension_numbers = #tpu.dot_dimension_numbers<[1], [0], [0], [1], [0, 0, 1, 1], [], []>} : vector<8x8xbf16>, vector<8x128xbf16>, vector<8x128xf32> -> vector<8x128xf32>
    %48 = arith.addf %43, %47 : vector<8x128xf32>
    %c0_56 = arith.constant 0 : index
    %c80 = arith.constant 80 : index
    %49 = vector.load %arg2[%c0_56, %c80] : memref<8x200xbf16, #tpu.memory_space<vmem>>, vector<8x8xbf16>
    %c0_57 = arith.constant 0 : index
    %c0_58 = arith.constant 0 : index
    %c0_59 = arith.constant 0 : index
    %c10 = arith.constant 10 : index
    %50 = vector.load %arg1[%c0_57, %c0_58, %c0_59, %c10] : memref<1x4x8x256xbf16, #tpu.memory_space<vmem>>, vector<1x1x8x128xbf16>
    %51 = vector.shape_cast %50 : vector<1x1x8x128xbf16> to vector<8x128xbf16>
    %cst_60 = arith.constant dense<0.000000e+00> : vector<8x128xf32>
    %52 = tpu.matmul %49, %51, %cst_60 {dimension_numbers = #tpu.dot_dimension_numbers<[1], [0], [0], [1], [0, 0, 1, 1], [], []>} : vector<8x8xbf16>, vector<8x128xbf16>, vector<8x128xf32> -> vector<8x128xf32>
    %53 = arith.addf %48, %52 : vector<8x128xf32>
    %c0_61 = arith.constant 0 : index
    %c88 = arith.constant 88 : index
    %54 = vector.load %arg2[%c0_61, %c88] : memref<8x200xbf16, #tpu.memory_space<vmem>>, vector<8x8xbf16>
    %c0_62 = arith.constant 0 : index
    %c1_63 = arith.constant 1 : index
    %c0_64 = arith.constant 0 : index
    %c10_65 = arith.constant 10 : index
    %55 = vector.load %arg1[%c0_62, %c1_63, %c0_64, %c10_65] : memref<1x4x8x256xbf16, #tpu.memory_space<vmem>>, vector<1x1x8x128xbf16>
    %56 = vector.shape_cast %55 : vector<1x1x8x128xbf16> to vector<8x128xbf16>
    %cst_66 = arith.constant dense<0.000000e+00> : vector<8x128xf32>
    %57 = tpu.matmul %54, %56, %cst_66 {dimension_numbers = #tpu.dot_dimension_numbers<[1], [0], [0], [1], [0, 0, 1, 1], [], []>} : vector<8x8xbf16>, vector<8x128xbf16>, vector<8x128xf32> -> vector<8x128xf32>
    %58 = arith.addf %53, %57 : vector<8x128xf32>
    %c0_67 = arith.constant 0 : index
    %c96 = arith.constant 96 : index
    %59 = vector.load %arg2[%c0_67, %c96] : memref<8x200xbf16, #tpu.memory_space<vmem>>, vector<8x8xbf16>
    %c0_68 = arith.constant 0 : index
    %c0_69 = arith.constant 0 : index
    %c0_70 = arith.constant 0 : index
    %c11 = arith.constant 11 : index
    %60 = vector.load %arg1[%c0_68, %c0_69, %c0_70, %c11] : memref<1x4x8x256xbf16, #tpu.memory_space<vmem>>, vector<1x1x8x128xbf16>
    %61 = vector.shape_cast %60 : vector<1x1x8x128xbf16> to vector<8x128xbf16>
    %cst_71 = arith.constant dense<0.000000e+00> : vector<8x128xf32>
    %62 = tpu.matmul %59, %61, %cst_71 {dimension_numbers = #tpu.dot_dimension_numbers<[1], [0], [0], [1], [0, 0, 1, 1], [], []>} : vector<8x8xbf16>, vector<8x128xbf16>, vector<8x128xf32> -> vector<8x128xf32>
    %63 = arith.addf %58, %62 : vector<8x128xf32>
    %c0_72 = arith.constant 0 : index
    %c104 = arith.constant 104 : index
    %64 = vector.load %arg2[%c0_72, %c104] : memref<8x200xbf16, #tpu.memory_space<vmem>>, vector<8x8xbf16>
    %c0_73 = arith.constant 0 : index
    %c1_74 = arith.constant 1 : index
    %c0_75 = arith.constant 0 : index
    %c11_76 = arith.constant 11 : index
    %65 = vector.load %arg1[%c0_73, %c1_74, %c0_75, %c11_76] : memref<1x4x8x256xbf16, #tpu.memory_space<vmem>>, vector<1x1x8x128xbf16>
    %66 = vector.shape_cast %65 : vector<1x1x8x128xbf16> to vector<8x128xbf16>
    %cst_77 = arith.constant dense<0.000000e+00> : vector<8x128xf32>
    %67 = tpu.matmul %64, %66, %cst_77 {dimension_numbers = #tpu.dot_dimension_numbers<[1], [0], [0], [1], [0, 0, 1, 1], [], []>} : vector<8x8xbf16>, vector<8x128xbf16>, vector<8x128xf32> -> vector<8x128xf32>
    %68 = arith.addf %63, %67 : vector<8x128xf32>
    %c0_78 = arith.constant 0 : index
    %c112 = arith.constant 112 : index
    %69 = vector.load %arg2[%c0_78, %c112] : memref<8x200xbf16, #tpu.memory_space<vmem>>, vector<8x8xbf16>
    %c0_79 = arith.constant 0 : index
    %c0_80 = arith.constant 0 : index
    %c0_81 = arith.constant 0 : index
    %c12 = arith.constant 12 : index
    %70 = vector.load %arg1[%c0_79, %c0_80, %c0_81, %c12] : memref<1x4x8x256xbf16, #tpu.memory_space<vmem>>, vector<1x1x8x128xbf16>
    %71 = vector.shape_cast %70 : vector<1x1x8x128xbf16> to vector<8x128xbf16>
    %cst_82 = arith.constant dense<0.000000e+00> : vector<8x128xf32>
    %72 = tpu.matmul %69, %71, %cst_82 {dimension_numbers = #tpu.dot_dimension_numbers<[1], [0], [0], [1], [0, 0, 1, 1], [], []>} : vector<8x8xbf16>, vector<8x128xbf16>, vector<8x128xf32> -> vector<8x128xf32>
    %73 = arith.addf %68, %72 : vector<8x128xf32>
    %c0_83 = arith.constant 0 : index
    %c120 = arith.constant 120 : index
    %74 = vector.load %arg2[%c0_83, %c120] : memref<8x200xbf16, #tpu.memory_space<vmem>>, vector<8x8xbf16>
    %c0_84 = arith.constant 0 : index
    %c2_85 = arith.constant 2 : index
    %c0_86 = arith.constant 0 : index
    %c10_87 = arith.constant 10 : index
    %75 = vector.load %arg1[%c0_84, %c2_85, %c0_86, %c10_87] : memref<1x4x8x256xbf16, #tpu.memory_space<vmem>>, vector<1x1x8x128xbf16>
    %76 = vector.shape_cast %75 : vector<1x1x8x128xbf16> to vector<8x128xbf16>
    %cst_88 = arith.constant dense<0.000000e+00> : vector<8x128xf32>
    %77 = tpu.matmul %74, %76, %cst_88 {dimension_numbers = #tpu.dot_dimension_numbers<[1], [0], [0], [1], [0, 0, 1, 1], [], []>} : vector<8x8xbf16>, vector<8x128xbf16>, vector<8x128xf32> -> vector<8x128xf32>
    %78 = arith.addf %73, %77 : vector<8x128xf32>
    %c0_89 = arith.constant 0 : index
    %c128 = arith.constant 128 : index
    %79 = vector.load %arg2[%c0_89, %c128] : memref<8x200xbf16, #tpu.memory_space<vmem>>, vector<8x8xbf16>
    %c0_90 = arith.constant 0 : index
    %c3_91 = arith.constant 3 : index
    %c0_92 = arith.constant 0 : index
    %c10_93 = arith.constant 10 : index
    %80 = vector.load %arg1[%c0_90, %c3_91, %c0_92, %c10_93] : memref<1x4x8x256xbf16, #tpu.memory_space<vmem>>, vector<1x1x8x128xbf16>
    %81 = vector.shape_cast %80 : vector<1x1x8x128xbf16> to vector<8x128xbf16>
    %cst_94 = arith.constant dense<0.000000e+00> : vector<8x128xf32>
    %82 = tpu.matmul %79, %81, %cst_94 {dimension_numbers = #tpu.dot_dimension_numbers<[1], [0], [0], [1], [0, 0, 1, 1], [], []>} : vector<8x8xbf16>, vector<8x128xbf16>, vector<8x128xf32> -> vector<8x128xf32>
    %83 = arith.addf %78, %82 : vector<8x128xf32>
    %c0_95 = arith.constant 0 : index
    %c136 = arith.constant 136 : index
    %84 = vector.load %arg2[%c0_95, %c136] : memref<8x200xbf16, #tpu.memory_space<vmem>>, vector<8x8xbf16>
    %c0_96 = arith.constant 0 : index
    %c2_97 = arith.constant 2 : index
    %c0_98 = arith.constant 0 : index
    %c11_99 = arith.constant 11 : index
    %85 = vector.load %arg1[%c0_96, %c2_97, %c0_98, %c11_99] : memref<1x4x8x256xbf16, #tpu.memory_space<vmem>>, vector<1x1x8x128xbf16>
    %86 = vector.shape_cast %85 : vector<1x1x8x128xbf16> to vector<8x128xbf16>
    %cst_100 = arith.constant dense<0.000000e+00> : vector<8x128xf32>
    %87 = tpu.matmul %84, %86, %cst_100 {dimension_numbers = #tpu.dot_dimension_numbers<[1], [0], [0], [1], [0, 0, 1, 1], [], []>} : vector<8x8xbf16>, vector<8x128xbf16>, vector<8x128xf32> -> vector<8x128xf32>
    %88 = arith.addf %83, %87 : vector<8x128xf32>
    %c0_101 = arith.constant 0 : index
    %c144 = arith.constant 144 : index
    %89 = vector.load %arg2[%c0_101, %c144] : memref<8x200xbf16, #tpu.memory_space<vmem>>, vector<8x8xbf16>
    %c0_102 = arith.constant 0 : index
    %c3_103 = arith.constant 3 : index
    %c0_104 = arith.constant 0 : index
    %c11_105 = arith.constant 11 : index
    %90 = vector.load %arg1[%c0_102, %c3_103, %c0_104, %c11_105] : memref<1x4x8x256xbf16, #tpu.memory_space<vmem>>, vector<1x1x8x128xbf16>
    %91 = vector.shape_cast %90 : vector<1x1x8x128xbf16> to vector<8x128xbf16>
    %cst_106 = arith.constant dense<0.000000e+00> : vector<8x128xf32>
    %92 = tpu.matmul %89, %91, %cst_106 {dimension_numbers = #tpu.dot_dimension_numbers<[1], [0], [0], [1], [0, 0, 1, 1], [], []>} : vector<8x8xbf16>, vector<8x128xbf16>, vector<8x128xf32> -> vector<8x128xf32>
    %93 = arith.addf %88, %92 : vector<8x128xf32>
    %c0_107 = arith.constant 0 : index
    %c152 = arith.constant 152 : index
    %94 = vector.load %arg2[%c0_107, %c152] : memref<8x200xbf16, #tpu.memory_space<vmem>>, vector<8x8xbf16>
    %c0_108 = arith.constant 0 : index
    %c2_109 = arith.constant 2 : index
    %c0_110 = arith.constant 0 : index
    %c12_111 = arith.constant 12 : index
    %95 = vector.load %arg1[%c0_108, %c2_109, %c0_110, %c12_111] : memref<1x4x8x256xbf16, #tpu.memory_space<vmem>>, vector<1x1x8x128xbf16>
    %96 = vector.shape_cast %95 : vector<1x1x8x128xbf16> to vector<8x128xbf16>
    %cst_112 = arith.constant dense<0.000000e+00> : vector<8x128xf32>
    %97 = tpu.matmul %94, %96, %cst_112 {dimension_numbers = #tpu.dot_dimension_numbers<[1], [0], [0], [1], [0, 0, 1, 1], [], []>} : vector<8x8xbf16>, vector<8x128xbf16>, vector<8x128xf32> -> vector<8x128xf32>
    %98 = arith.addf %93, %97 : vector<8x128xf32>
    %c0_113 = arith.constant 0 : index
    %c160 = arith.constant 160 : index
    %99 = vector.load %arg2[%c0_113, %c160] : memref<8x200xbf16, #tpu.memory_space<vmem>>, vector<8x8xbf16>
    %c0_114 = arith.constant 0 : index
    %c0_115 = arith.constant 0 : index
    %c0_116 = arith.constant 0 : index
    %c20 = arith.constant 20 : index
    %100 = vector.load %arg1[%c0_114, %c0_115, %c0_116, %c20] : memref<1x4x8x256xbf16, #tpu.memory_space<vmem>>, vector<1x1x8x128xbf16>
    %101 = vector.shape_cast %100 : vector<1x1x8x128xbf16> to vector<8x128xbf16>
    %cst_117 = arith.constant dense<0.000000e+00> : vector<8x128xf32>
    %102 = tpu.matmul %99, %101, %cst_117 {dimension_numbers = #tpu.dot_dimension_numbers<[1], [0], [0], [1], [0, 0, 1, 1], [], []>} : vector<8x8xbf16>, vector<8x128xbf16>, vector<8x128xf32> -> vector<8x128xf32>
    %103 = arith.addf %98, %102 : vector<8x128xf32>
    %c0_118 = arith.constant 0 : index
    %c168 = arith.constant 168 : index
    %104 = vector.load %arg2[%c0_118, %c168] : memref<8x200xbf16, #tpu.memory_space<vmem>>, vector<8x8xbf16>
    %c0_119 = arith.constant 0 : index
    %c1_120 = arith.constant 1 : index
    %c0_121 = arith.constant 0 : index
    %c20_122 = arith.constant 20 : index
    %105 = vector.load %arg1[%c0_119, %c1_120, %c0_121, %c20_122] : memref<1x4x8x256xbf16, #tpu.memory_space<vmem>>, vector<1x1x8x128xbf16>
    %106 = vector.shape_cast %105 : vector<1x1x8x128xbf16> to vector<8x128xbf16>
    %cst_123 = arith.constant dense<0.000000e+00> : vector<8x128xf32>
    %107 = tpu.matmul %104, %106, %cst_123 {dimension_numbers = #tpu.dot_dimension_numbers<[1], [0], [0], [1], [0, 0, 1, 1], [], []>} : vector<8x8xbf16>, vector<8x128xbf16>, vector<8x128xf32> -> vector<8x128xf32>
    %108 = arith.addf %103, %107 : vector<8x128xf32>
    %c0_124 = arith.constant 0 : index
    %c176 = arith.constant 176 : index
    %109 = vector.load %arg2[%c0_124, %c176] : memref<8x200xbf16, #tpu.memory_space<vmem>>, vector<8x8xbf16>
    %c0_125 = arith.constant 0 : index
    %c0_126 = arith.constant 0 : index
    %c0_127 = arith.constant 0 : index
    %c21 = arith.constant 21 : index
    %110 = vector.load %arg1[%c0_125, %c0_126, %c0_127, %c21] : memref<1x4x8x256xbf16, #tpu.memory_space<vmem>>, vector<1x1x8x128xbf16>
    %111 = vector.shape_cast %110 : vector<1x1x8x128xbf16> to vector<8x128xbf16>
    %cst_128 = arith.constant dense<0.000000e+00> : vector<8x128xf32>
    %112 = tpu.matmul %109, %111, %cst_128 {dimension_numbers = #tpu.dot_dimension_numbers<[1], [0], [0], [1], [0, 0, 1, 1], [], []>} : vector<8x8xbf16>, vector<8x128xbf16>, vector<8x128xf32> -> vector<8x128xf32>
    %113 = arith.addf %108, %112 : vector<8x128xf32>
    %c0_129 = arith.constant 0 : index
    %c184 = arith.constant 184 : index
    %114 = vector.load %arg2[%c0_129, %c184] : memref<8x200xbf16, #tpu.memory_space<vmem>>, vector<8x8xbf16>
    %c0_130 = arith.constant 0 : index
    %c1_131 = arith.constant 1 : index
    %c0_132 = arith.constant 0 : index
    %c21_133 = arith.constant 21 : index
    %115 = vector.load %arg1[%c0_130, %c1_131, %c0_132, %c21_133] : memref<1x4x8x256xbf16, #tpu.memory_space<vmem>>, vector<1x1x8x128xbf16>
    %116 = vector.shape_cast %115 : vector<1x1x8x128xbf16> to vector<8x128xbf16>
    %cst_134 = arith.constant dense<0.000000e+00> : vector<8x128xf32>
    %117 = tpu.matmul %114, %116, %cst_134 {dimension_numbers = #tpu.dot_dimension_numbers<[1], [0], [0], [1], [0, 0, 1, 1], [], []>} : vector<8x8xbf16>, vector<8x128xbf16>, vector<8x128xf32> -> vector<8x128xf32>
    %118 = arith.addf %113, %117 : vector<8x128xf32>
    %c0_135 = arith.constant 0 : index
    %c192 = arith.constant 192 : index
    %119 = vector.load %arg2[%c0_135, %c192] : memref<8x200xbf16, #tpu.memory_space<vmem>>, vector<8x8xbf16>
    %c0_136 = arith.constant 0 : index
    %c0_137 = arith.constant 0 : index
    %c0_138 = arith.constant 0 : index
    %c22 = arith.constant 22 : index
    %120 = vector.load %arg1[%c0_136, %c0_137, %c0_138, %c22] : memref<1x4x8x256xbf16, #tpu.memory_space<vmem>>, vector<1x1x8x128xbf16>
    %121 = vector.shape_cast %120 : vector<1x1x8x128xbf16> to vector<8x128xbf16>
    %cst_139 = arith.constant dense<0.000000e+00> : vector<8x128xf32>
    %122 = tpu.matmul %119, %121, %cst_139 {dimension_numbers = #tpu.dot_dimension_numbers<[1], [0], [0], [1], [0, 0, 1, 1], [], []>} : vector<8x8xbf16>, vector<8x128xbf16>, vector<8x128xf32> -> vector<8x128xf32>
    %123 = arith.addf %118, %122 : vector<8x128xf32>
    %c0_140 = arith.constant 0 : index
    %c0_141 = arith.constant 0 : index
    %124 = vector.load %arg3[%c0_140, %c0_141] : memref<8x1xf32, #tpu.memory_space<vmem>>, vector<8x1xf32>
    %125 = vector.broadcast %124 : vector<8x1xf32> to vector<8x128xf32>
    %126 = arith.addf %123, %125 : vector<8x128xf32>
    %c0_142 = arith.constant 0 : index
    %c0_143 = arith.constant 0 : index
    %127 = vector.load %arg4[%c0_142, %c0_143] : memref<1x128xf32, #tpu.memory_space<vmem>>, vector<1x128xf32>
    %128 = vector.broadcast %127 : vector<1x128xf32> to vector<8x128xf32>
    %129 = arith.mulf %126, %128 : vector<8x128xf32>
    %cst_144 = arith.constant 0.000000e+00 : bf16
    %130 = vector.broadcast %cst_144 : bf16 to vector<8x11xbf16>
    %c0_145 = arith.constant 0 : index
    %c0_146 = arith.constant 0 : index
    %131 = vector.load %arg9[%c0_145, %c0_146] : memref<8x256xbf16, #tpu.memory_space<vmem>>, vector<8x11xbf16>
    tpu.vector_store %arg9[%c0_145, %c0_146], %130 {strides = array<i32>} : memref<8x256xbf16, #tpu.memory_space<vmem>>, vector<8x11xbf16>,
    %132 = arith.truncf %129 : vector<8x128xf32> to vector<8x128xbf16>
    %c0_147 = arith.constant 0 : index
    %c11_148 = arith.constant 11 : index
    %133 = vector.load %arg9[%c0_147, %c11_148] : memref<8x256xbf16, #tpu.memory_space<vmem>>, vector<8x128xbf16>
    tpu.vector_store %arg9[%c0_147, %c11_148], %132 {strides = array<i32>} : memref<8x256xbf16, #tpu.memory_space<vmem>>, vector<8x128xbf16>,
    %c0_149 = arith.constant 0 : index
    %c0_150 = arith.constant 0 : index
    %134 = vector.load %arg5[%c0_149, %c0_150] : memref<24x72xbf16, #tpu.memory_space<vmem>>, vector<24x8xbf16>
    %c0_151 = arith.constant 0 : index
    %c0_152 = arith.constant 0 : index
    %135 = vector.load %arg9[%c0_151, %c0_152] : memref<8x256xbf16, #tpu.memory_space<vmem>>, vector<8x128xbf16>
    %cst_153 = arith.constant dense<0.000000e+00> : vector<24x128xf32>
    %136 = tpu.matmul %134, %135, %cst_153 {dimension_numbers = #tpu.dot_dimension_numbers<[1], [0], [0], [1], [0, 0, 1, 1], [], []>} : vector<24x8xbf16>, vector<8x128xbf16>, vector<24x128xf32> -> vector<24x128xf32>
    %c0_154 = arith.constant 0 : index
    %c8_155 = arith.constant 8 : index
    %137 = vector.load %arg5[%c0_154, %c8_155] : memref<24x72xbf16, #tpu.memory_space<vmem>>, vector<24x8xbf16>
    %c0_156 = arith.constant 0 : index
    %c1_157 = arith.constant 1 : index
    %138 = vector.load %arg9[%c0_156, %c1_157] : memref<8x256xbf16, #tpu.memory_space<vmem>>, vector<8x128xbf16>
    %cst_158 = arith.constant dense<0.000000e+00> : vector<24x128xf32>
    %139 = tpu.matmul %137, %138, %cst_158 {dimension_numbers = #tpu.dot_dimension_numbers<[1], [0], [0], [1], [0, 0, 1, 1], [], []>} : vector<24x8xbf16>, vector<8x128xbf16>, vector<24x128xf32> -> vector<24x128xf32>
    %140 = arith.addf %136, %139 : vector<24x128xf32>
    %c0_159 = arith.constant 0 : index
    %c16_160 = arith.constant 16 : index
    %141 = vector.load %arg5[%c0_159, %c16_160] : memref<24x72xbf16, #tpu.memory_space<vmem>>, vector<24x8xbf16>
    %c0_161 = arith.constant 0 : index
    %c2_162 = arith.constant 2 : index
    %142 = vector.load %arg9[%c0_161, %c2_162] : memref<8x256xbf16, #tpu.memory_space<vmem>>, vector<8x128xbf16>
    %cst_163 = arith.constant dense<0.000000e+00> : vector<24x128xf32>
    %143 = tpu.matmul %141, %142, %cst_163 {dimension_numbers = #tpu.dot_dimension_numbers<[1], [0], [0], [1], [0, 0, 1, 1], [], []>} : vector<24x8xbf16>, vector<8x128xbf16>, vector<24x128xf32> -> vector<24x128xf32>
    %144 = arith.addf %140, %143 : vector<24x128xf32>
    %c0_164 = arith.constant 0 : index
    %c24_165 = arith.constant 24 : index
    %145 = vector.load %arg5[%c0_164, %c24_165] : memref<24x72xbf16, #tpu.memory_space<vmem>>, vector<24x8xbf16>
    %c0_166 = arith.constant 0 : index
    %c10_167 = arith.constant 10 : index
    %146 = vector.load %arg9[%c0_166, %c10_167] : memref<8x256xbf16, #tpu.memory_space<vmem>>, vector<8x128xbf16>
    %cst_168 = arith.constant dense<0.000000e+00> : vector<24x128xf32>
    %147 = tpu.matmul %145, %146, %cst_168 {dimension_numbers = #tpu.dot_dimension_numbers<[1], [0], [0], [1], [0, 0, 1, 1], [], []>} : vector<24x8xbf16>, vector<8x128xbf16>, vector<24x128xf32> -> vector<24x128xf32>
    %148 = arith.addf %144, %147 : vector<24x128xf32>
    %c0_169 = arith.constant 0 : index
    %c32_170 = arith.constant 32 : index
    %149 = vector.load %arg5[%c0_169, %c32_170] : memref<24x72xbf16, #tpu.memory_space<vmem>>, vector<24x8xbf16>
    %c0_171 = arith.constant 0 : index
    %c11_172 = arith.constant 11 : index
    %150 = vector.load %arg9[%c0_171, %c11_172] : memref<8x256xbf16, #tpu.memory_space<vmem>>, vector<8x128xbf16>
    %cst_173 = arith.constant dense<0.000000e+00> : vector<24x128xf32>
    %151 = tpu.matmul %149, %150, %cst_173 {dimension_numbers = #tpu.dot_dimension_numbers<[1], [0], [0], [1], [0, 0, 1, 1], [], []>} : vector<24x8xbf16>, vector<8x128xbf16>, vector<24x128xf32> -> vector<24x128xf32>
    %152 = arith.addf %148, %151 : vector<24x128xf32>
    %c0_174 = arith.constant 0 : index
    %c40_175 = arith.constant 40 : index
    %153 = vector.load %arg5[%c0_174, %c40_175] : memref<24x72xbf16, #tpu.memory_space<vmem>>, vector<24x8xbf16>
    %c0_176 = arith.constant 0 : index
    %c12_177 = arith.constant 12 : index
    %154 = vector.load %arg9[%c0_176, %c12_177] : memref<8x256xbf16, #tpu.memory_space<vmem>>, vector<8x128xbf16>
    %cst_178 = arith.constant dense<0.000000e+00> : vector<24x128xf32>
    %155 = tpu.matmul %153, %154, %cst_178 {dimension_numbers = #tpu.dot_dimension_numbers<[1], [0], [0], [1], [0, 0, 1, 1], [], []>} : vector<24x8xbf16>, vector<8x128xbf16>, vector<24x128xf32> -> vector<24x128xf32>
    %156 = arith.addf %152, %155 : vector<24x128xf32>
    %c0_179 = arith.constant 0 : index
    %c48_180 = arith.constant 48 : index
    %157 = vector.load %arg5[%c0_179, %c48_180] : memref<24x72xbf16, #tpu.memory_space<vmem>>, vector<24x8xbf16>
    %c0_181 = arith.constant 0 : index
    %c20_182 = arith.constant 20 : index
    %158 = vector.load %arg9[%c0_181, %c20_182] : memref<8x256xbf16, #tpu.memory_space<vmem>>, vector<8x128xbf16>
    %cst_183 = arith.constant dense<0.000000e+00> : vector<24x128xf32>
    %159 = tpu.matmul %157, %158, %cst_183 {dimension_numbers = #tpu.dot_dimension_numbers<[1], [0], [0], [1], [0, 0, 1, 1], [], []>} : vector<24x8xbf16>, vector<8x128xbf16>, vector<24x128xf32> -> vector<24x128xf32>
    %160 = arith.addf %156, %159 : vector<24x128xf32>
    %c0_184 = arith.constant 0 : index
    %c56_185 = arith.constant 56 : index
    %161 = vector.load %arg5[%c0_184, %c56_185] : memref<24x72xbf16, #tpu.memory_space<vmem>>, vector<24x8xbf16>
    %c0_186 = arith.constant 0 : index
    %c21_187 = arith.constant 21 : index
    %162 = vector.load %arg9[%c0_186, %c21_187] : memref<8x256xbf16, #tpu.memory_space<vmem>>, vector<8x128xbf16>
    %cst_188 = arith.constant dense<0.000000e+00> : vector<24x128xf32>
    %163 = tpu.matmul %161, %162, %cst_188 {dimension_numbers = #tpu.dot_dimension_numbers<[1], [0], [0], [1], [0, 0, 1, 1], [], []>} : vector<24x8xbf16>, vector<8x128xbf16>, vector<24x128xf32> -> vector<24x128xf32>
    %164 = arith.addf %160, %163 : vector<24x128xf32>
    %c0_189 = arith.constant 0 : index
    %c64_190 = arith.constant 64 : index
    %165 = vector.load %arg5[%c0_189, %c64_190] : memref<24x72xbf16, #tpu.memory_space<vmem>>, vector<24x8xbf16>
    %c0_191 = arith.constant 0 : index
    %c22_192 = arith.constant 22 : index
    %166 = vector.load %arg9[%c0_191, %c22_192] : memref<8x256xbf16, #tpu.memory_space<vmem>>, vector<8x128xbf16>
    %cst_193 = arith.constant dense<0.000000e+00> : vector<24x128xf32>
    %167 = tpu.matmul %165, %166, %cst_193 {dimension_numbers = #tpu.dot_dimension_numbers<[1], [0], [0], [1], [0, 0, 1, 1], [], []>} : vector<24x8xbf16>, vector<8x128xbf16>, vector<24x128xf32> -> vector<24x128xf32>
    %168 = arith.addf %164, %167 : vector<24x128xf32>
    %c0_194 = arith.constant 0 : index
    %c0_195 = arith.constant 0 : index
    %169 = vector.load %arg6[%c0_194, %c0_195] : memref<24x1xf32, #tpu.memory_space<vmem>>, vector<24x1xf32>
    %170 = vector.broadcast %169 : vector<24x1xf32> to vector<24x128xf32>
    %171 = arith.addf %168, %170 : vector<24x128xf32>
    %172 = vector.extract_strided_slice %171 {offsets = [0, 0], sizes = [8, 128], strides = [1, 1]} : vector<24x128xf32> to vector<8x128xf32>
    %cst_196 = arith.constant 5.000000e-01 : f32
    %173 = vector.broadcast %cst_196 : f32 to vector<8x128xf32>
    %174 = arith.mulf %173, %172 : vector<8x128xf32>
    %175 = math.tanh %174 : vector<8x128xf32>
    %cst_197 = arith.constant 1.000000e+00 : f32
    %176 = vector.broadcast %cst_197 : f32 to vector<8x128xf32>
    %177 = arith.addf %175, %176 : vector<8x128xf32>
    %cst_198 = arith.constant 5.000000e-01 : f32
    %178 = vector.broadcast %cst_198 : f32 to vector<8x128xf32>
    %179 = arith.mulf %178, %177 : vector<8x128xf32>
    %180 = vector.extract_strided_slice %171 {offsets = [8, 0], sizes = [8, 128], strides = [1, 1]} : vector<24x128xf32> to vector<8x128xf32>
    %cst_199 = arith.constant 5.000000e-01 : f32
    %181 = vector.broadcast %cst_199 : f32 to vector<8x128xf32>
    %182 = arith.mulf %181, %180 : vector<8x128xf32>
    %183 = math.tanh %182 : vector<8x128xf32>
    %cst_200 = arith.constant 1.000000e+00 : f32
    %184 = vector.broadcast %cst_200 : f32 to vector<8x128xf32>
    %185 = arith.addf %183, %184 : vector<8x128xf32>
    %cst_201 = arith.constant 5.000000e-01 : f32
    %186 = vector.broadcast %cst_201 : f32 to vector<8x128xf32>
    %187 = arith.mulf %186, %185 : vector<8x128xf32>
    %188 = vector.extract_strided_slice %171 {offsets = [16, 0], sizes = [8, 128], strides = [1, 1]} : vector<24x128xf32> to vector<8x128xf32>
    %189 = math.tanh %188 : vector<8x128xf32>
    %190 = arith.mulf %179, %189 : vector<8x128xf32>
    %191 = math.tanh %190 : vector<8x128xf32>
    %192 = arith.mulf %187, %191 : vector<8x128xf32>
    %c0_202 = arith.constant 0 : index
    %c0_203 = arith.constant 0 : index
    %c0_204 = arith.constant 0 : index
    %193 = vector.load %arg8[%c0_202, %c0_203, %c0_204] : memref<1x8x128xf32, #tpu.memory_space<vmem>>, vector<1x8x128xf32>
    %194 = vector.shape_cast %193 : vector<1x8x128xf32> to vector<8x128xf32>
    %195 = vector.shape_cast %190 : vector<8x128xf32> to vector<1x8x128xf32>
    tpu.vector_store %arg8[%c0_202, %c0_203, %c0_204], %195 {strides = array<i32>} : memref<1x8x128xf32, #tpu.memory_space<vmem>>, vector<1x8x128xf32>,
    %c0_205 = arith.constant 0 : index
    %c0_206 = arith.constant 0 : index
    %c0_207 = arith.constant 0 : index
    %196 = vector.load %arg7[%c0_205, %c0_206, %c0_207] : memref<1x8x128xf32, #tpu.memory_space<vmem>>, vector<1x8x128xf32>
    %197 = vector.shape_cast %196 : vector<1x8x128xf32> to vector<8x128xf32>
    %198 = vector.shape_cast %192 : vector<8x128xf32> to vector<1x8x128xf32>
    tpu.vector_store %arg7[%c0_205, %c0_206, %c0_207], %198 {strides = array<i32>} : memref<1x8x128xf32, #tpu.memory_space<vmem>>, vector<1x8x128xf32>,
    return
  }
  func.func @transform_0(%arg0: i32) -> (i32, i32, i32, i32) {
    %c0_i32 = arith.constant 0 : i32
    %c0_i32_0 = arith.constant 0 : i32
    %c0_i32_1 = arith.constant 0 : i32
    %c0_i32_2 = arith.constant 0 : i32
    return %arg0, %c0_i32, %c0_i32_0, %c0_i32_1 : i32, i32, i32, i32
  }
  func.func @transform_1(%arg0: i32) -> (i32, i32) {
    %c0_i32 = arith.constant 0 : i32
    %c0_i32_0 = arith.constant 0 : i32
    %c0_i32_1 = arith.constant 0 : i32
    return %c0_i32, %c0_i32_0 : i32, i32
  }
  func.func @transform_2(%arg0: i32) -> (i32, i32) {
    %c0_i32 = arith.constant 0 : i32
    %c0_i32_0 = arith.constant 0 : i32
    %c0_i32_1 = arith.constant 0 : i32
    return %c0_i32, %c0_i32_0 : i32, i32
  }
  func.func @transform_3(%arg0: i32) -> (i32, i32) {
    %c0_i32 = arith.constant 0 : i32
    %c0_i32_0 = arith.constant 0 : i32
    %c0_i32_1 = arith.constant 0 : i32
    return %c0_i32, %c0_i32_0 : i32, i32
  }
  func.func @transform_4(%arg0: i32) -> (i32, i32) {
    %c0_i32 = arith.constant 0 : i32
    %c0_i32_0 = arith.constant 0 : i32
    %c0_i32_1 = arith.constant 0 : i32
    return %c0_i32, %c0_i32_0 : i32, i32
  }
  func.func @transform_5(%arg0: i32) -> (i32, i32) {
    %c0_i32 = arith.constant 0 : i32
    %c0_i32_0 = arith.constant 0 : i32
    %c0_i32_1 = arith.constant 0 : i32
    return %c0_i32, %c0_i32_0 : i32, i32
  }
  func.func @transform_6(%arg0: i32) -> (i32, i32, i32) {
    %c0_i32 = arith.constant 0 : i32
    %c0_i32_0 = arith.constant 0 : i32
    %c0_i32_1 = arith.constant 0 : i32
    return %arg0, %c0_i32, %c0_i32_0 : i32, i32, i32
  }
  func.func @transform_7(%arg0: i32) -> (i32, i32, i32) {
    %c0_i32 = arith.constant 0 : i32
    %c0_i32_0 = arith.constant 0 : i32
    %c0_i32_1 = arith.constant 0 : i32
    return %arg0, %c0_i32, %c0_i32_0 : i32, i32, i32
  }
}

</mosaic_0001>

<llo_original>
// kernel: encoder_layer_forward.1
$region0: #{encoder_layer_forward.1}
  #allocation0 [shape = 'u32[]', space=smem, size = 0x4, offset = 0x4, fixed_abs, tag = 'smem constant byte address 0x4 - core index']
  #allocation1 [shape = 'u32[72,128]{1,0:T(1,128)}', space=vmem, size = 0x9000, scoped, tag = 'internal scratch']
  #allocation2 [shape = 'bf16[8,256]{1,0:T(8,128)(2,1)}', space=vmem, size = 0x1000, scoped, tag = 'scratch operand']
  %s0 = inlined_call_operand.vmem [shape: bf16[2,4,8,256], index: 0, kind: input, shape index: {}]
  %s1 = inlined_call_operand.vmem [shape: bf16[8,200], index: 1, kind: input, shape index: {}]
  %s2 = inlined_call_operand.vmem [shape: f32[8,1], index: 2, kind: input, shape index: {}]
  %s3 = inlined_call_operand.vmem [shape: f32[1,128], index: 3, kind: input, shape index: {}]
  %s4 = inlined_call_operand.vmem [shape: bf16[24,72], index: 4, kind: input, shape index: {}]
  %s5 = inlined_call_operand.vmem [shape: f32[24,1], index: 5, kind: input, shape index: {}]
  %s6 = inlined_call_operand.vmem [shape: f32[2,8,128], index: 6, kind: output, shape index: {0}]
  %s7 = inlined_call_operand.vmem [shape: f32[2,8,128], index: 7, kind: output, shape index: {1}]
  %8 = xla_tuple %s6, %s7
  %s9 = sld [smem:[#allocation0]]
  $region65: #{encoder_layer_forward.1} parent=0
    _
  %s11 = ssub.s32 1, %s9
  %s12 = scalar_select 0, %s11, %s9
  loop: start=0, step=1, limit=4
  $region2: #{encoder_layer_forward.1} parent=0 // loop_pre_header
    _
  $region3: #{encoder_layer_forward.1} parent=0 // loop_header
    %s14 = sphi 0, %s18
    %p15 = scmp.ge.s32.totalorder %s14, 4
    %s24 = sphi 0, %s26
    %s27 = sphi 0, %s24
    %s28 = sphi 0, %s27
    %s44 = sphi 0, %s28
    %s48 = sphi 0, %s48
    %s50 = sphi 0, %s48
    %s51 = sphi 0, %s50
    %s65 = sphi 0, %s51
    %s69 = sphi 0, %s69
    %s71 = sphi 0, %s69
    %s72 = sphi 0, %s71
    %s86 = sphi 0, %s72
    %s90 = sphi 0, %s90
    %s92 = sphi 0, %s90
    %s93 = sphi 0, %s92
    %s107 = sphi 0, %s93
    %s111 = sphi 0, %s111
    %s113 = sphi 0, %s111
    %s114 = sphi 0, %s113
    %s128 = sphi 0, %s114
    %s132 = sphi 0, %s132
    %s134 = sphi 0, %s132
    %s135 = sphi 0, %s134
    %s149 = sphi 0, %s135
    %s155 = sphi 0, %s157
    %s158 = sphi 0, %s155
    %s159 = sphi 0, %s158
    %s175 = sphi 0, %s159
    %s181 = sphi 0, %s183
    %s184 = sphi 0, %s181
    %s185 = sphi 0, %s184
    %s201 = sphi 0, %s185
  $region4: #{encoder_layer_forward.1} parent=0 // loop_header_branch
    %17 = sbr.rel (%p15) target = $region8
  $region5: #{encoder_layer_forward.1} parent=0 // loop_body
    %s19 = ssub.s32 %s14, 1
    %s20 = ssub.s32 %s14, 2
    %s21 = sadd.s32 %s14, 1
    %s22 = ssub.s32 %s14, %s21
    %p23 = scmp.eq.s32.totalorder %s22, 0
    %s25 = sadd.s32 %s24, 1
    %s26 = scalar_select %p23, %s24, %s25
    %p29 = pneg %p23
    %p30 = scmp.eq.s32.totalorder %s14, 1
    %p31 = por %p29, %p30
    %p32 = scmp.ne.s32.totalorder %s24, %s27
    %p33 = scmp.eq.s32.totalorder %s14, 0
    %p34 = por %p32, %p33
    %p35 = scmp.ne.s32.totalorder %s24, %s27
    %p36 = scmp.eq.s32.totalorder %s19, 1
    %p37 = por %p35, %p36
    %p38 = scmp.ne.s32.totalorder %s27, %s28
    %p39 = scmp.eq.s32.totalorder %s19, 0
    %p40 = por %p38, %p39
    %p41 = scmp.ne.s32.totalorder %s27, %s28
    %p42 = scmp.eq.s32.totalorder %s20, 1
    %p43 = por %p41, %p42
    %p45 = scmp.ne.s32.totalorder %s28, %s44
    %p46 = scmp.eq.s32.totalorder %s20, 0
    %p47 = por %p45, %p46
    %s49 = sadd.s32 %s48, 1
    %p52 = scmp.eq.s32.totalorder %s14, 1
    %p53 = scmp.ne.s32.totalorder %s48, %s50
    %p54 = scmp.eq.s32.totalorder %s14, 0
    %p55 = por %p53, %p54
    %p56 = scmp.ne.s32.totalorder %s48, %s50
    %p57 = scmp.eq.s32.totalorder %s19, 1
    %p58 = por %p56, %p57
    %p59 = scmp.ne.s32.totalorder %s50, %s51
    %p60 = scmp.eq.s32.totalorder %s19, 0
    %p61 = por %p59, %p60
    %p62 = scmp.ne.s32.totalorder %s50, %s51
    %p63 = scmp.eq.s32.totalorder %s20, 1
    %p64 = por %p62, %p63
    %p66 = scmp.ne.s32.totalorder %s51, %s65
    %p67 = scmp.eq.s32.totalorder %s20, 0
    %p68 = por %p66, %p67
    %s70 = sadd.s32 %s69, 1
    %p73 = scmp.eq.s32.totalorder %s14, 1
    %p74 = scmp.ne.s32.totalorder %s69, %s71
    %p75 = scmp.eq.s32.totalorder %s14, 0
    %p76 = por %p74, %p75
    %p77 = scmp.ne.s32.totalorder %s69, %s71
    %p78 = scmp.eq.s32.totalorder %s19, 1
    %p79 = por %p77, %p78
    %p80 = scmp.ne.s32.totalorder %s71, %s72
    %p81 = scmp.eq.s32.totalorder %s19, 0
    %p82 = por %p80, %p81
    %p83 = scmp.ne.s32.totalorder %s71, %s72
    %p84 = scmp.eq.s32.totalorder %s20, 1
    %p85 = por %p83, %p84
    %p87 = scmp.ne.s32.totalorder %s72, %s86
    %p88 = scmp.eq.s32.totalorder %s20, 0
    %p89 = por %p87, %p88
    %s91 = sadd.s32 %s90, 1
    %p94 = scmp.eq.s32.totalorder %s14, 1
    %p95 = scmp.ne.s32.totalorder %s90, %s92
    %p96 = scmp.eq.s32.totalorder %s14, 0
    %p97 = por %p95, %p96
    %p98 = scmp.ne.s32.totalorder %s90, %s92
    %p99 = scmp.eq.s32.totalorder %s19, 1
    %p100 = por %p98, %p99
    %p101 = scmp.ne.s32.totalorder %s92, %s93
    %p102 = scmp.eq.s32.totalorder %s19, 0
    %p103 = por %p101, %p102
    %p104 = scmp.ne.s32.totalorder %s92, %s93
    %p105 = scmp.eq.s32.totalorder %s20, 1
    %p106 = por %p104, %p105
    %p108 = scmp.ne.s32.totalorder %s93, %s107
    %p109 = scmp.eq.s32.totalorder %s20, 0
    %p110 = por %p108, %p109
    %s112 = sadd.s32 %s111, 1
    %p115 = scmp.eq.s32.totalorder %s14, 1
    %p116 = scmp.ne.s32.totalorder %s111, %s113
    %p117 = scmp.eq.s32.totalorder %s14, 0
    %p118 = por %p116, %p117
    %p119 = scmp.ne.s32.totalorder %s111, %s113
    %p120 = scmp.eq.s32.totalorder %s19, 1
    %p121 = por %p119, %p120
    %p122 = scmp.ne.s32.totalorder %s113, %s114
    %p123 = scmp.eq.s32.totalorder %s19, 0
    %p124 = por %p122, %p123
    %p125 = scmp.ne.s32.totalorder %s113, %s114
    %p126 = scmp.eq.s32.totalorder %s20, 1
    %p127 = por %p125, %p126
    %p129 = scmp.ne.s32.totalorder %s114, %s128
    %p130 = scmp.eq.s32.totalorder %s20, 0
    %p131 = por %p129, %p130
    %s133 = sadd.s32 %s132, 1
    %p136 = scmp.eq.s32.totalorder %s14, 1
    %p137 = scmp.ne.s32.totalorder %s132, %s134
    %p138 = scmp.eq.s32.totalorder %s14, 0
    %p139 = por %p137, %p138
    %p140 = scmp.ne.s32.totalorder %s132, %s134
    %p141 = scmp.eq.s32.totalorder %s19, 1
    %p142 = por %p140, %p141
    %p143 = scmp.ne.s32.totalorder %s134, %s135
    %p144 = scmp.eq.s32.totalorder %s19, 0
    %p145 = por %p143, %p144
    %p146 = scmp.ne.s32.totalorder %s134, %s135
    %p147 = scmp.eq.s32.totalorder %s20, 1
    %p148 = por %p146, %p147
    %p150 = scmp.ne.s32.totalorder %s135, %s149
    %p151 = scmp.eq.s32.totalorder %s20, 0
    %p152 = por %p150, %p151
    %s153 = ssub.s32 %s14, %s21
    %p154 = scmp.eq.s32.totalorder %s153, 0
    %s156 = sadd.s32 %s155, 1
    %s157 = scalar_select %p154, %s155, %s156
    %p160 = pneg %p154
    %p161 = scmp.eq.s32.totalorder %s14, 1
    %p162 = por %p160, %p161
    %p163 = scmp.ne.s32.totalorder %s155, %s158
    %p164 = scmp.eq.s32.totalorder %s14, 0
    %p165 = por %p163, %p164
    %p166 = scmp.ne.s32.totalorder %s155, %s158
    %p167 = scmp.eq.s32.totalorder %s19, 1
    %p168 = por %p166, %p167
    %p169 = scmp.ne.s32.totalorder %s158, %s159
    %p170 = scmp.eq.s32.totalorder %s19, 0
    %p171 = por %p169, %p170
    %p172 = scmp.ne.s32.totalorder %s158, %s159
    %p173 = scmp.eq.s32.totalorder %s20, 1
    %p174 = por %p172, %p173
    %p176 = scmp.ne.s32.totalorder %s159, %s175
    %p177 = scmp.eq.s32.totalorder %s20, 0
    %p178 = por %p176, %p177
    %s179 = ssub.s32 %s14, %s21
    %p180 = scmp.eq.s32.totalorder %s179, 0
    %s182 = sadd.s32 %s181, 1
    %s183 = scalar_select %p180, %s181, %s182
    %p186 = pneg %p180
    %p187 = scmp.eq.s32.totalorder %s14, 1
    %p188 = por %p186, %p187
    %p189 = scmp.ne.s32.totalorder %s181, %s184
    %p190 = scmp.eq.s32.totalorder %s14, 0
    %p191 = por %p189, %p190
    %p192 = scmp.ne.s32.totalorder %s181, %s184
    %p193 = scmp.eq.s32.totalorder %s19, 1
    %p194 = por %p192, %p193
    %p195 = scmp.ne.s32.totalorder %s184, %s185
    %p196 = scmp.eq.s32.totalorder %s19, 0
    %p197 = por %p195, %p196
    %p198 = scmp.ne.s32.totalorder %s184, %s185
    %p199 = scmp.eq.s32.totalorder %s20, 1
    %p200 = por %p198, %p199
    %p202 = scmp.ne.s32.totalorder %s185, %s201
    %p203 = scmp.eq.s32.totalorder %s20, 0
    %p204 = por %p202, %p203
    %p205 = scmp.le.s32.totalorder 1, %s14
    %p206 = scmp.lt.s32.totalorder %s14, 3
    %p207 = pnand %p205, %p206
    %p208 = pneg %p207
    // Predicated region
    $region9: #{encoder_layer_forward.1} parent=5 // pred_check
      _
    $region10: #{encoder_layer_forward.1} parent=5 // pred_check_branch
      %210 = sbr.rel (%p207) target = $region12
    $region11: #{encoder_layer_forward.1} parent=5 // pred_region
      %s211 = ssub.s32 %s14, 1
      // Predicated region
      $region13: #{encoder_layer_forward.1} parent=11 // pred_check
        %p212 = pneg %p61
      $region14: #{encoder_layer_forward.1} parent=11 // pred_check_branch
        %214 = sbr.rel (%p212) target = $region16
      $region15: #{encoder_layer_forward.1} parent=11 // pred_region
        _
      $region16: #{encoder_layer_forward.1} parent=11 // pred_fallthru
        _
      // Predicated region
      $region17: #{encoder_layer_forward.1} parent=11 // pred_check
        %p215 = pneg %p82
      $region18: #{encoder_layer_forward.1} parent=11 // pred_check_branch
        %217 = sbr.rel (%p215) target = $region20
      $region19: #{encoder_layer_forward.1} parent=11 // pred_region
        _
      $region20: #{encoder_layer_forward.1} parent=11 // pred_fallthru
        _
      // Predicated region
      $region21: #{encoder_layer_forward.1} parent=11 // pred_check
        %p218 = pneg %p103
      $region22: #{encoder_layer_forward.1} parent=11 // pred_check_branch
        %220 = sbr.rel (%p218) target = $region24
      $region23: #{encoder_layer_forward.1} parent=11 // pred_region
        _
      $region24: #{encoder_layer_forward.1} parent=11 // pred_fallthru
        _
      // Predicated region
      $region25: #{encoder_layer_forward.1} parent=11 // pred_check
        %p221 = pneg %p124
      $region26: #{encoder_layer_forward.1} parent=11 // pred_check_branch
        %223 = sbr.rel (%p221) target = $region28
      $region27: #{encoder_layer_forward.1} parent=11 // pred_region
        _
      $region28: #{encoder_layer_forward.1} parent=11 // pred_fallthru
        _
      // Predicated region
      $region29: #{encoder_layer_forward.1} parent=11 // pred_check
        %p224 = pneg %p145
      $region30: #{encoder_layer_forward.1} parent=11 // pred_check_branch
        %226 = sbr.rel (%p224) target = $region32
      $region31: #{encoder_layer_forward.1} parent=11 // pred_region
        _
      $region32: #{encoder_layer_forward.1} parent=11 // pred_fallthru
        _
    $region12: #{encoder_layer_forward.1} parent=5 // pred_fallthru
      _
    %p227 = scmp.lt.s32.totalorder %s14, 2
    // Predicated region
    $region33: #{encoder_layer_forward.1} parent=5 // pred_check
      %p228 = pneg %p227
    $region34: #{encoder_layer_forward.1} parent=5 // pred_check_branch
      %230 = sbr.rel (%p228) target = $region36
    $region35: #{encoder_layer_forward.1} parent=5 // pred_region
      // Predicated region
      $region37: #{encoder_layer_forward.1} parent=35 // pred_check
        %p231 = pneg %p34
      $region38: #{encoder_layer_forward.1} parent=35 // pred_check_branch
        %233 = sbr.rel (%p231) target = $region40
      $region39: #{encoder_layer_forward.1} parent=35 // pred_region
        %p234 = scmp.lt.s32.totalorder %s14, 1
        %s235 = scalar_select %p234, %s14, 1
        %s236 = smul.addr %s235, 8
        %s237 = smul.addr %s236, 4
        %s238 = scalar_lea.vmem %s0, %s237
      $region40: #{encoder_layer_forward.1} parent=35 // pred_fallthru
        _
    $region36: #{encoder_layer_forward.1} parent=5 // pred_fallthru
      _
    %p239 = scmp.le.s32.totalorder 1, %s14
    %p240 = scmp.lt.s32.totalorder %s14, 3
    %p241 = pnand %p239, %p240
    %p242 = pneg %p241
    // Predicated region
    $region41: #{encoder_layer_forward.1} parent=5 // pred_check
      _
    $region42: #{encoder_layer_forward.1} parent=5 // pred_check_branch
      %244 = sbr.rel (%p241) target = $region44
    $region43: #{encoder_layer_forward.1} parent=5 // pred_region
      %s245 = ssub.s32 %s14, 1
      %p246 = scmp.lt.s32.totalorder %s19, 1
      %s247 = scalar_select %p246, %s19, 1
      %s248 = smul.addr %s247, 8
      %s249 = smul.addr %s248, 4
      %s250 = scalar_lea.vmem %s0, %s249
      %p251 = pneg %p40
      %p252 = pneg %p37
      %p253 = pneg %p61
      %p254 = pneg %p58
      %p255 = pneg %p82
      %p256 = pneg %p79
      %p257 = pneg %p103
      %p258 = pneg %p100
      %p259 = pneg %p124
      %p260 = pneg %p121
      %p261 = pneg %p145
      %p262 = pneg %p142
      %p263 = pneg %p171
      %p264 = pneg %p168
      %p265 = scmp.lt.s32.totalorder %s19, 1
      %s266 = scalar_select %p265, %s19, 1
      %s267 = smul.addr %s266, 8
      %s268 = scalar_lea.vmem %s6, %s267
      %p269 = pneg %p197
      %p270 = pneg %p194
      %p271 = scmp.lt.s32.totalorder %s19, 1
      %s272 = scalar_select %p271, %s19, 1
      %s273 = smul.addr %s272, 8
      %s274 = scalar_lea.vmem %s7, %s273
      %p275 = scmp.lt.s32.totalorder %s19, 1
      %s276 = scalar_select %p275, %s19, 1
      %s277 = smul.addr %s276, 8
      %s278 = smul.addr %s277, 4
      %s279 = scalar_lea.vmem %s0, %s278
      %p280 = scmp.lt.s32.totalorder %s19, 1
      %s281 = scalar_select %p280, %s19, 1
      %s282 = smul.addr %s281, 8
      %s283 = scalar_lea.vmem %s6, %s282
      %p284 = scmp.lt.s32.totalorder %s19, 1
      %s285 = scalar_select %p284, %s19, 1
      %s286 = smul.addr %s285, 8
      %s287 = scalar_lea.vmem %s7, %s286
      %v289 = vld [vmem:[%s1] sm:$0xf]
      %v290 = vld [vmem:[%s279] sm:$0xf]
      %s291 = scalar_lea.vmem %s279, 8
      %v292 = vld [vmem:[%s291] sm:$0xf]
      %v294 = vunpack.c.l.b16 %v289
      %v295 = vpack.c.b16 %v294, %v294
      %296 = vrot.lane.b32.xlu0 %v295, 120
      %v297 = vpop.permute.xlu0 %296
      %vm298 = vcmask 64512
      %v300 = vsel %vm298, %v297, 0
      %vm302 = vcmask 1043456
      %v304 = vsel %vm302, %v292, 0
      %306 = vmatpush.bf16.msra.mxu0 0
      %307 = vmatpush.bf16.msra.mxu0 0
      %308 = vmatpush.bf16.msra.mxu0 0
      %309 = vmatpush.bf16.msra.mxu0 0
      %310 = vmatpush.bf16.msra.mxu0 0
      %311 = vmatpush.bf16.msra.mxu0 0
      %312 = vmatpush.bf16.msra.mxu0 0
      %313 = vmatpush.bf16.msra.mxu0 %v304
      %314 = vmatmul.bf16.gmra.mxu0 %v300
      %v315 = vpop.f32.mrf.mxu0
      %v316 = vadd.f32 0.0, %v315
      %v317 = vpop.f32.mrf.mxu0
      %318 = vdwg.mxu0
      %v320 = vsel %vm298, %v289, 0
      %v323 = vsel %vm302, %v290, 0
      %325 = vmatpush.bf16.msra.mxu0 0
      %326 = vmatpush.bf16.msra.mxu0 0
      %327 = vmatpush.bf16.msra.mxu0 0
      %328 = vmatpush.bf16.msra.mxu0 0
      %329 = vmatpush.bf16.msra.mxu0 0
      %330 = vmatpush.bf16.msra.mxu0 0
      %331 = vmatpush.bf16.msra.mxu0 0
      %332 = vmatpush.bf16.msra.mxu0 %v323
      %333 = vmatmul.bf16.gmra.mxu0 %v320
      %v334 = vpop.f32.mrf.mxu0
      %v335 = vadd.f32 %v316, %v334
      %v336 = vpop.f32.mrf.mxu0
      %337 = vdwg.mxu0
      %v338 = vld [vmem:[%s279] sm:$0xff]
      %339 = vrot.lane.b32.xlu0 %v295, 112
      %v340 = vpop.permute.xlu0 %339
      %v342 = vunpack.c.l.b16 %v338
      %v343 = vunpack.c.h.b16 %v338
      %v344 = vpack.c.b16 %v342, %v342
      %v345 = vpack.c.b16 %v343, %v343
      %346 = vrot.lane.b32.xlu0 %v344, 127
      %v347 = vpop.permute.xlu0 %346
      %348 = vrot.lane.b32.xlu0 %v345, 127
      %v349 = vpop.permute.xlu0 %348
      %vm350 = vcmask 1039360
      %v351 = vsel %vm350, %v347, %v349
      %v353 = vsel %vm298, %v340, 0
      %v356 = vsel %vm302, %v351, 0
      %358 = vmatpush.bf16.msra.mxu0 0
      %359 = vmatpush.bf16.msra.mxu0 0
      %360 = vmatpush.bf16.msra.mxu0 0
      %361 = vmatpush.bf16.msra.mxu0 0
      %362 = vmatpush.bf16.msra.mxu0 0
      %363 = vmatpush.bf16.msra.mxu0 0
      %364 = vmatpush.bf16.msra.mxu0 0
      %365 = vmatpush.bf16.msra.mxu0 %v356
      %366 = vmatmul.bf16.gmra.mxu0 %v353
      %v367 = vpop.f32.mrf.mxu0
      %v368 = vadd.f32 0.0, %v367
      %v369 = vpop.f32.mrf.mxu0
      %370 = vdwg.mxu0
      %v371 = vadd.f32 %v335, %v368
      %v372 = vld [vmem:[%s291] sm:$0xff]
      %373 = vrot.lane.b32.xlu0 %v295, 104
      %v374 = vpop.permute.xlu0 %373
      %v376 = vunpack.c.l.b16 %v372
      %v377 = vunpack.c.h.b16 %v372
      %v378 = vpack.c.b16 %v376, %v376
      %v379 = vpack.c.b16 %v377, %v377
      %380 = vrot.lane.b32.xlu0 %v378, 127
      %v381 = vpop.permute.xlu0 %380
      %382 = vrot.lane.b32.xlu0 %v379, 127
      %v383 = vpop.permute.xlu0 %382
      %v384 = vsel %vm350, %v381, %v383
      %v386 = vsel %vm298, %v374, 0
      %v389 = vsel %vm302, %v384, 0
      %391 = vmatpush.bf16.msra.mxu0 0
      %392 = vmatpush.bf16.msra.mxu0 0
      %393 = vmatpush.bf16.msra.mxu0 0
      %394 = vmatpush.bf16.msra.mxu0 0
      %395 = vmatpush.bf16.msra.mxu0 0
      %396 = vmatpush.bf16.msra.mxu0 0
      %397 = vmatpush.bf16.msra.mxu0 0
      %398 = vmatpush.bf16.msra.mxu0 %v389
      %399 = vmatmul.bf16.gmra.mxu0 %v386
      %v400 = vpop.f32.mrf.mxu0
      %v401 = vadd.f32 0.0, %v400
      %v402 = vpop.f32.mrf.mxu0
      %403 = vdwg.mxu0
      %v404 = vadd.f32 %v371, %v401
      %405 = vrot.lane.b32.xlu0 %v295, 96
      %v406 = vpop.permute.xlu0 %405
      %407 = vrot.lane.b32.xlu0 %v344, 126
      %v408 = vpop.permute.xlu0 %407
      %409 = vrot.lane.b32.xlu0 %v345, 126
      %v410 = vpop.permute.xlu0 %409
      %vm411 = vcmask 1031168
      %v412 = vsel %vm411, %v408, %v410
      %v414 = vsel %vm298, %v406, 0
      %v417 = vsel %vm302, %v412, 0
      %419 = vmatpush.bf16.msra.mxu0 0
      %420 = vmatpush.bf16.msra.mxu0 0
      %421 = vmatpush.bf16.msra.mxu0 0
      %422 = vmatpush.bf16.msra.mxu0 0
      %423 = vmatpush.bf16.msra.mxu0 0
      %424 = vmatpush.bf16.msra.mxu0 0
      %425 = vmatpush.bf16.msra.mxu0 0
      %426 = vmatpush.bf16.msra.mxu0 %v417
      %427 = vmatmul.bf16.gmra.mxu0 %v414
      %v428 = vpop.f32.mrf.mxu0
      %v429 = vadd.f32 0.0, %v428
      %v430 = vpop.f32.mrf.mxu0
      %431 = vdwg.mxu0
      %v432 = vadd.f32 %v404, %v429
      %s433 = scalar_lea.vmem %s279, 16
      %v434 = vld [vmem:[%s433] sm:$0xf]
      %435 = vrot.lane.b32.xlu0 %v295, 88
      %v436 = vpop.permute.xlu0 %435
      %v438 = vsel %vm298, %v436, 0
      %v441 = vsel %vm302, %v434, 0
      %443 = vmatpush.bf16.msra.mxu0 0
      %444 = vmatpush.bf16.msra.mxu0 0
      %445 = vmatpush.bf16.msra.mxu0 0
      %446 = vmatpush.bf16.msra.mxu0 0
      %447 = vmatpush.bf16.msra.mxu0 0
      %448 = vmatpush.bf16.msra.mxu0 0
      %449 = vmatpush.bf16.msra.mxu0 0
      %450 = vmatpush.bf16.msra.mxu0 %v441
      %451 = vmatmul.bf16.gmra.mxu0 %v438
      %v452 = vpop.f32.mrf.mxu0
      %v453 = vadd.f32 0.0, %v452
      %v454 = vpop.f32.mrf.mxu0
      %455 = vdwg.mxu0
      %v456 = vadd.f32 %v432, %v453
      %s457 = scalar_lea.vmem %s279, 24
      %v458 = vld [vmem:[%s457] sm:$0xf]
      %459 = vrot.lane.b32.xlu0 %v295, 80
      %v460 = vpop.permute.xlu0 %459
      %v462 = vsel %vm298, %v460, 0
      %v465 = vsel %vm302, %v458, 0
      %467 = vmatpush.bf16.msra.mxu0 0
      %468 = vmatpush.bf16.msra.mxu0 0
      %469 = vmatpush.bf16.msra.mxu0 0
      %470 = vmatpush.bf16.msra.mxu0 0
      %471 = vmatpush.bf16.msra.mxu0 0
      %472 = vmatpush.bf16.msra.mxu0 0
      %473 = vmatpush.bf16.msra.mxu0 0
      %474 = vmatpush.bf16.msra.mxu0 %v465
      %475 = vmatmul.bf16.gmra.mxu0 %v462
      %v476 = vpop.f32.mrf.mxu0
      %v477 = vadd.f32 0.0, %v476
      %v478 = vpop.f32.mrf.mxu0
      %479 = vdwg.mxu0
      %v480 = vadd.f32 %v456, %v477
      %v481 = vld [vmem:[%s433] sm:$0xff]
      %482 = vrot.lane.b32.xlu0 %v295, 72
      %v483 = vpop.permute.xlu0 %482
      %v485 = vunpack.c.l.b16 %v481
      %v486 = vunpack.c.h.b16 %v481
      %v487 = vpack.c.b16 %v485, %v485
      %v488 = vpack.c.b16 %v486, %v486
      %489 = vrot.lane.b32.xlu0 %v487, 127
      %v490 = vpop.permute.xlu0 %489
      %491 = vrot.lane.b32.xlu0 %v488, 127
      %v492 = vpop.permute.xlu0 %491
      %v493 = vsel %vm350, %v490, %v492
      %v495 = vsel %vm298, %v483, 0
      %v498 = vsel %vm302, %v493, 0
      %500 = vmatpush.bf16.msra.mxu0 0
      %501 = vmatpush.bf16.msra.mxu0 0
      %502 = vmatpush.bf16.msra.mxu0 0
      %503 = vmatpush.bf16.msra.mxu0 0
      %504 = vmatpush.bf16.msra.mxu0 0
      %505 = vmatpush.bf16.msra.mxu0 0
      %506 = vmatpush.bf16.msra.mxu0 0
      %507 = vmatpush.bf16.msra.mxu0 %v498
      %508 = vmatmul.bf16.gmra.mxu0 %v495
      %v509 = vpop.f32.mrf.mxu0
      %v510 = vadd.f32 0.0, %v509
      %v511 = vpop.f32.mrf.mxu0
      %512 = vdwg.mxu0
      %v513 = vadd.f32 %v480, %v510
      %v514 = vld [vmem:[%s457] sm:$0xff]
      %515 = vrot.lane.b32.xlu0 %v295, 64
      %v516 = vpop.permute.xlu0 %515
      %v518 = vunpack.c.l.b16 %v514
      %v519 = vunpack.c.h.b16 %v514
      %v520 = vpack.c.b16 %v518, %v518
      %v521 = vpack.c.b16 %v519, %v519
      %522 = vrot.lane.b32.xlu0 %v520, 127
      %v523 = vpop.permute.xlu0 %522
      %524 = vrot.lane.b32.xlu0 %v521, 127
      %v525 = vpop.permute.xlu0 %524
      %v526 = vsel %vm350, %v523, %v525
      %v528 = vsel %vm298, %v516, 0
      %v531 = vsel %vm302, %v526, 0
      %533 = vmatpush.bf16.msra.mxu0 0
      %534 = vmatpush.bf16.msra.mxu0 0
      %535 = vmatpush.bf16.msra.mxu0 0
      %536 = vmatpush.bf16.msra.mxu0 0
      %537 = vmatpush.bf16.msra.mxu0 0
      %538 = vmatpush.bf16.msra.mxu0 0
      %539 = vmatpush.bf16.msra.mxu0 0
      %540 = vmatpush.bf16.msra.mxu0 %v531
      %541 = vmatmul.bf16.gmra.mxu0 %v528
      %v542 = vpop.f32.mrf.mxu0
      %v543 = vadd.f32 0.0, %v542
      %v544 = vpop.f32.mrf.mxu0
      %545 = vdwg.mxu0
      %v546 = vadd.f32 %v513, %v543
      %547 = vrot.lane.b32.xlu0 %v295, 56
      %v548 = vpop.permute.xlu0 %547
      %549 = vrot.lane.b32.xlu0 %v487, 126
      %v550 = vpop.permute.xlu0 %549
      %551 = vrot.lane.b32.xlu0 %v488, 126
      %v552 = vpop.permute.xlu0 %551
      %v553 = vsel %vm411, %v550, %v552
      %v555 = vsel %vm298, %v548, 0
      %v558 = vsel %vm302, %v553, 0
      %560 = vmatpush.bf16.msra.mxu0 0
      %561 = vmatpush.bf16.msra.mxu0 0
      %562 = vmatpush.bf16.msra.mxu0 0
      %563 = vmatpush.bf16.msra.mxu0 0
      %564 = vmatpush.bf16.msra.mxu0 0
      %565 = vmatpush.bf16.msra.mxu0 0
      %566 = vmatpush.bf16.msra.mxu0 0
      %567 = vmatpush.bf16.msra.mxu0 %v558
      %568 = vmatmul.bf16.gmra.mxu0 %v555
      %v569 = vpop.f32.mrf.mxu0
      %v570 = vadd.f32 0.0, %v569
      %v571 = vpop.f32.mrf.mxu0
      %572 = vdwg.mxu0
      %v573 = vadd.f32 %v546, %v570
      %574 = vrot.lane.b32.xlu0 %v295, 48
      %v575 = vpop.permute.xlu0 %574
      %576 = vrot.lane.b32.xlu0 %v344, 118
      %v577 = vpop.permute.xlu0 %576
      %578 = vrot.lane.b32.xlu0 %v345, 118
      %v579 = vpop.permute.xlu0 %578
      %vm580 = vcmask 965632
      %v581 = vsel %vm580, %v577, %v579
      %v583 = vsel %vm298, %v575, 0
      %v586 = vsel %vm302, %v581, 0
      %588 = vmatpush.bf16.msra.mxu0 0
      %589 = vmatpush.bf16.msra.mxu0 0
      %590 = vmatpush.bf16.msra.mxu0 0
      %591 = vmatpush.bf16.msra.mxu0 0
      %592 = vmatpush.bf16.msra.mxu0 0
      %593 = vmatpush.bf16.msra.mxu0 0
      %594 = vmatpush.bf16.msra.mxu0 0
      %595 = vmatpush.bf16.msra.mxu0 %v586
      %596 = vmatmul.bf16.gmra.mxu0 %v583
      %v597 = vpop.f32.mrf.mxu0
      %v598 = vadd.f32 0.0, %v597
      %v599 = vpop.f32.mrf.mxu0
      %600 = vdwg.mxu0
      %v601 = vadd.f32 %v573, %v598
      %602 = vrot.lane.b32.xlu0 %v295, 40
      %v603 = vpop.permute.xlu0 %602
      %604 = vrot.lane.b32.xlu0 %v378, 118
      %v605 = vpop.permute.xlu0 %604
      %606 = vrot.lane.b32.xlu0 %v379, 118
      %v607 = vpop.permute.xlu0 %606
      %v608 = vsel %vm580, %v605, %v607
      %v610 = vsel %vm298, %v603, 0
      %v613 = vsel %vm302, %v608, 0
      %615 = vmatpush.bf16.msra.mxu0 0
      %616 = vmatpush.bf16.msra.mxu0 0
      %617 = vmatpush.bf16.msra.mxu0 0
      %618 = vmatpush.bf16.msra.mxu0 0
      %619 = vmatpush.bf16.msra.mxu0 0
      %620 = vmatpush.bf16.msra.mxu0 0
      %621 = vmatpush.bf16.msra.mxu0 0
      %622 = vmatpush.bf16.msra.mxu0 %v613
      %623 = vmatmul.bf16.gmra.mxu0 %v610
      %v624 = vpop.f32.mrf.mxu0
      %v625 = vadd.f32 0.0, %v624
      %v626 = vpop.f32.mrf.mxu0
      %627 = vdwg.mxu0
      %v628 = vadd.f32 %v601, %v625
      %629 = vrot.lane.b32.xlu0 %v295, 32
      %v630 = vpop.permute.xlu0 %629
      %631 = vrot.lane.b32.xlu0 %v344, 117
      %v632 = vpop.permute.xlu0 %631
      %633 = vrot.lane.b32.xlu0 %v345, 117
      %v634 = vpop.permute.xlu0 %633
      %vm635 = vcmask 957440
      %v636 = vsel %vm635, %v632, %v634
      %v638 = vsel %vm298, %v630, 0
      %v641 = vsel %vm302, %v636, 0
      %643 = vmatpush.bf16.msra.mxu0 0
      %644 = vmatpush.bf16.msra.mxu0 0
      %645 = vmatpush.bf16.msra.mxu0 0
      %646 = vmatpush.bf16.msra.mxu0 0
      %647 = vmatpush.bf16.msra.mxu0 0
      %648 = vmatpush.bf16.msra.mxu0 0
      %649 = vmatpush.bf16.msra.mxu0 0
      %650 = vmatpush.bf16.msra.mxu0 %v641
      %651 = vmatmul.bf16.gmra.mxu0 %v638
      %v652 = vpop.f32.mrf.mxu0
      %v653 = vadd.f32 0.0, %v652
      %v654 = vpop.f32.mrf.mxu0
      %655 = vdwg.mxu0
      %v656 = vadd.f32 %v628, %v653
      %657 = vrot.lane.b32.xlu0 %v295, 24
      %v658 = vpop.permute.xlu0 %657
      %659 = vrot.lane.b32.xlu0 %v378, 117
      %v660 = vpop.permute.xlu0 %659
      %661 = vrot.lane.b32.xlu0 %v379, 117
      %v662 = vpop.permute.xlu0 %661
      %v663 = vsel %vm635, %v660, %v662
      %v665 = vsel %vm298, %v658, 0
      %v668 = vsel %vm302, %v663, 0
      %670 = vmatpush.bf16.msra.mxu0 0
      %671 = vmatpush.bf16.msra.mxu0 0
      %672 = vmatpush.bf16.msra.mxu0 0
      %673 = vmatpush.bf16.msra.mxu0 0
      %674 = vmatpush.bf16.msra.mxu0 0
      %675 = vmatpush.bf16.msra.mxu0 0
      %676 = vmatpush.bf16.msra.mxu0 0
      %677 = vmatpush.bf16.msra.mxu0 %v668
      %678 = vmatmul.bf16.gmra.mxu0 %v665
      %v679 = vpop.f32.mrf.mxu0
      %v680 = vadd.f32 0.0, %v679
      %v681 = vpop.f32.mrf.mxu0
      %682 = vdwg.mxu0
      %v683 = vadd.f32 %v656, %v680
      %684 = vrot.lane.b32.xlu0 %v295, 16
      %v685 = vpop.permute.xlu0 %684
      %686 = vrot.lane.b32.xlu0 %v344, 116
      %v687 = vpop.permute.xlu0 %686
      %688 = vrot.lane.b32.xlu0 %v345, 116
      %v689 = vpop.permute.xlu0 %688
      %vm690 = vcmask 949248
      %v691 = vsel %vm690, %v687, %v689
      %v693 = vsel %vm298, %v685, 0
      %v696 = vsel %vm302, %v691, 0
      %698 = vmatpush.bf16.msra.mxu0 0
      %699 = vmatpush.bf16.msra.mxu0 0
      %700 = vmatpush.bf16.msra.mxu0 0
      %701 = vmatpush.bf16.msra.mxu0 0
      %702 = vmatpush.bf16.msra.mxu0 0
      %703 = vmatpush.bf16.msra.mxu0 0
      %704 = vmatpush.bf16.msra.mxu0 0
      %705 = vmatpush.bf16.msra.mxu0 %v696
      %706 = vmatmul.bf16.gmra.mxu0 %v693
      %v707 = vpop.f32.mrf.mxu0
      %v708 = vadd.f32 0.0, %v707
      %v709 = vpop.f32.mrf.mxu0
      %710 = vdwg.mxu0
      %v711 = vadd.f32 %v683, %v708
      %712 = vrot.lane.b32.xlu0 %v295, 8
      %v713 = vpop.permute.xlu0 %712
      %714 = vrot.lane.b32.xlu0 %v487, 118
      %v715 = vpop.permute.xlu0 %714
      %716 = vrot.lane.b32.xlu0 %v488, 118
      %v717 = vpop.permute.xlu0 %716
      %v718 = vsel %vm580, %v715, %v717
      %v720 = vsel %vm298, %v713, 0
      %v723 = vsel %vm302, %v718, 0
      %725 = vmatpush.bf16.msra.mxu0 0
      %726 = vmatpush.bf16.msra.mxu0 0
      %727 = vmatpush.bf16.msra.mxu0 0
      %728 = vmatpush.bf16.msra.mxu0 0
      %729 = vmatpush.bf16.msra.mxu0 0
      %730 = vmatpush.bf16.msra.mxu0 0
      %731 = vmatpush.bf16.msra.mxu0 0
      %732 = vmatpush.bf16.msra.mxu0 %v723
      %733 = vmatmul.bf16.gmra.mxu0 %v720
      %v734 = vpop.f32.mrf.mxu0
      %v735 = vadd.f32 0.0, %v734
      %v736 = vpop.f32.mrf.mxu0
      %737 = vdwg.mxu0
      %v738 = vadd.f32 %v711, %v735
      %v739 = vld [vmem:[%s1 + $0x4] sm:$0xf]
      %740 = vrot.lane.b32.xlu0 %v520, 118
      %v741 = vpop.permute.xlu0 %740
      %742 = vrot.lane.b32.xlu0 %v521, 118
      %v743 = vpop.permute.xlu0 %742
      %v744 = vsel %vm580, %v741, %v743
      %v746 = vsel %vm298, %v739, 0
      %v749 = vsel %vm302, %v744, 0
      %751 = vmatpush.bf16.msra.mxu0 0
      %752 = vmatpush.bf16.msra.mxu0 0
      %753 = vmatpush.bf16.msra.mxu0 0
      %754 = vmatpush.bf16.msra.mxu0 0
      %755 = vmatpush.bf16.msra.mxu0 0
      %756 = vmatpush.bf16.msra.mxu0 0
      %757 = vmatpush.bf16.msra.mxu0 0
      %758 = vmatpush.bf16.msra.mxu0 %v749
      %759 = vmatmul.bf16.gmra.mxu0 %v746
      %v760 = vpop.f32.mrf.mxu0
      %v761 = vadd.f32 0.0, %v760
      %v762 = vpop.f32.mrf.mxu0
      %763 = vdwg.mxu0
      %v764 = vadd.f32 %v738, %v761
      %v766 = vunpack.c.l.b16 %v739
      %v767 = vpack.c.b16 %v766, %v766
      %768 = vrot.lane.b32.xlu0 %v767, 120
      %v769 = vpop.permute.xlu0 %768
      %770 = vrot.lane.b32.xlu0 %v487, 117
      %v771 = vpop.permute.xlu0 %770
      %772 = vrot.lane.b32.xlu0 %v488, 117
      %v773 = vpop.permute.xlu0 %772
      %v774 = vsel %vm635, %v771, %v773
      %v776 = vsel %vm298, %v769, 0
      %v779 = vsel %vm302, %v774, 0
      %781 = vmatpush.bf16.msra.mxu0 0
      %782 = vmatpush.bf16.msra.mxu0 0
      %783 = vmatpush.bf16.msra.mxu0 0
      %784 = vmatpush.bf16.msra.mxu0 0
      %785 = vmatpush.bf16.msra.mxu0 0
      %786 = vmatpush.bf16.msra.mxu0 0
      %787 = vmatpush.bf16.msra.mxu0 0
      %788 = vmatpush.bf16.msra.mxu0 %v779
      %789 = vmatmul.bf16.gmra.mxu0 %v776
      %v790 = vpop.f32.mrf.mxu0
      %v791 = vadd.f32 0.0, %v790
      %v792 = vpop.f32.mrf.mxu0
      %793 = vdwg.mxu0
      %v794 = vadd.f32 %v764, %v791
      %795 = vrot.lane.b32.xlu0 %v767, 112
      %v796 = vpop.permute.xlu0 %795
      %797 = vrot.lane.b32.xlu0 %v520, 117
      %v798 = vpop.permute.xlu0 %797
      %799 = vrot.lane.b32.xlu0 %v521, 117
      %v800 = vpop.permute.xlu0 %799
      %v801 = vsel %vm635, %v798, %v800
      %v803 = vsel %vm298, %v796, 0
      %v806 = vsel %vm302, %v801, 0
      %808 = vmatpush.bf16.msra.mxu0 0
      %809 = vmatpush.bf16.msra.mxu0 0
      %810 = vmatpush.bf16.msra.mxu0 0
      %811 = vmatpush.bf16.msra.mxu0 0
      %812 = vmatpush.bf16.msra.mxu0 0
      %813 = vmatpush.bf16.msra.mxu0 0
      %814 = vmatpush.bf16.msra.mxu0 0
      %815 = vmatpush.bf16.msra.mxu0 %v806
      %816 = vmatmul.bf16.gmra.mxu0 %v803
      %v817 = vpop.f32.mrf.mxu0
      %v818 = vadd.f32 0.0, %v817
      %v819 = vpop.f32.mrf.mxu0
      %820 = vdwg.mxu0
      %v821 = vadd.f32 %v794, %v818
      %822 = vrot.lane.b32.xlu0 %v767, 104
      %v823 = vpop.permute.xlu0 %822
      %824 = vrot.lane.b32.xlu0 %v487, 116
      %v825 = vpop.permute.xlu0 %824
      %826 = vrot.lane.b32.xlu0 %v488, 116
      %v827 = vpop.permute.xlu0 %826
      %v828 = vsel %vm690, %v825, %v827
      %v830 = vsel %vm298, %v823, 0
      %v833 = vsel %vm302, %v828, 0
      %835 = vmatpush.bf16.msra.mxu0 0
      %836 = vmatpush.bf16.msra.mxu0 0
      %837 = vmatpush.bf16.msra.mxu0 0
      %838 = vmatpush.bf16.msra.mxu0 0
      %839 = vmatpush.bf16.msra.mxu0 0
      %840 = vmatpush.bf16.msra.mxu0 0
      %841 = vmatpush.bf16.msra.mxu0 0
      %842 = vmatpush.bf16.msra.mxu0 %v833
      %843 = vmatmul.bf16.gmra.mxu0 %v830
      %v844 = vpop.f32.mrf.mxu0
      %v845 = vadd.f32 0.0, %v844
      %v846 = vpop.f32.mrf.mxu0
      %847 = vdwg.mxu0
      %v848 = vadd.f32 %v821, %v845
      %849 = vrot.lane.b32.xlu0 %v767, 96
      %v850 = vpop.permute.xlu0 %849
      %851 = vrot.lane.b32.xlu0 %v344, 108
      %v852 = vpop.permute.xlu0 %851
      %853 = vrot.lane.b32.xlu0 %v345, 108
      %v854 = vpop.permute.xlu0 %853
      %vm855 = vcmask 883712
      %v856 = vsel %vm855, %v852, %v854
      %v858 = vsel %vm298, %v850, 0
      %v861 = vsel %vm302, %v856, 0
      %863 = vmatpush.bf16.msra.mxu0 0
      %864 = vmatpush.bf16.msra.mxu0 0
      %865 = vmatpush.bf16.msra.mxu0 0
      %866 = vmatpush.bf16.msra.mxu0 0
      %867 = vmatpush.bf16.msra.mxu0 0
      %868 = vmatpush.bf16.msra.mxu0 0
      %869 = vmatpush.bf16.msra.mxu0 0
      %870 = vmatpush.bf16.msra.mxu0 %v861
      %871 = vmatmul.bf16.gmra.mxu0 %v858
      %v872 = vpop.f32.mrf.mxu0
      %v873 = vadd.f32 0.0, %v872
      %v874 = vpop.f32.mrf.mxu0
      %875 = vdwg.mxu0
      %v876 = vadd.f32 %v848, %v873
      %877 = vrot.lane.b32.xlu0 %v767, 88
      %v878 = vpop.permute.xlu0 %877
      %879 = vrot.lane.b32.xlu0 %v378, 108
      %v880 = vpop.permute.xlu0 %879
      %881 = vrot.lane.b32.xlu0 %v379, 108
      %v882 = vpop.permute.xlu0 %881
      %v883 = vsel %vm855, %v880, %v882
      %v885 = vsel %vm298, %v878, 0
      %v888 = vsel %vm302, %v883, 0
      %890 = vmatpush.bf16.msra.mxu0 0
      %891 = vmatpush.bf16.msra.mxu0 0
      %892 = vmatpush.bf16.msra.mxu0 0
      %893 = vmatpush.bf16.msra.mxu0 0
      %894 = vmatpush.bf16.msra.mxu0 0
      %895 = vmatpush.bf16.msra.mxu0 0
      %896 = vmatpush.bf16.msra.mxu0 0
      %897 = vmatpush.bf16.msra.mxu0 %v888
      %898 = vmatmul.bf16.gmra.mxu0 %v885
      %v899 = vpop.f32.mrf.mxu0
      %v900 = vadd.f32 0.0, %v899
      %v901 = vpop.f32.mrf.mxu0
      %902 = vdwg.mxu0
      %v903 = vadd.f32 %v876, %v900
      %904 = vrot.lane.b32.xlu0 %v767, 80
      %v905 = vpop.permute.xlu0 %904
      %906 = vrot.lane.b32.xlu0 %v344, 107
      %v907 = vpop.permute.xlu0 %906
      %908 = vrot.lane.b32.xlu0 %v345, 107
      %v909 = vpop.permute.xlu0 %908
      %vm910 = vcmask 875520
      %v911 = vsel %vm910, %v907, %v909
      %v913 = vsel %vm298, %v905, 0
      %v916 = vsel %vm302, %v911, 0
      %918 = vmatpush.bf16.msra.mxu0 0
      %919 = vmatpush.bf16.msra.mxu0 0
      %920 = vmatpush.bf16.msra.mxu0 0
      %921 = vmatpush.bf16.msra.mxu0 0
      %922 = vmatpush.bf16.msra.mxu0 0
      %923 = vmatpush.bf16.msra.mxu0 0
      %924 = vmatpush.bf16.msra.mxu0 0
      %925 = vmatpush.bf16.msra.mxu0 %v916
      %926 = vmatmul.bf16.gmra.mxu0 %v913
      %v927 = vpop.f32.mrf.mxu0
      %v928 = vadd.f32 0.0, %v927
      %v929 = vpop.f32.mrf.mxu0
      %930 = vdwg.mxu0
      %v931 = vadd.f32 %v903, %v928
      %932 = vrot.lane.b32.xlu0 %v767, 72
      %v933 = vpop.permute.xlu0 %932
      %934 = vrot.lane.b32.xlu0 %v378, 107
      %v935 = vpop.permute.xlu0 %934
      %936 = vrot.lane.b32.xlu0 %v379, 107
      %v937 = vpop.permute.xlu0 %936
      %v938 = vsel %vm910, %v935, %v937
      %v940 = vsel %vm298, %v933, 0
      %v943 = vsel %vm302, %v938, 0
      %945 = vmatpush.bf16.msra.mxu0 0
      %946 = vmatpush.bf16.msra.mxu0 0
      %947 = vmatpush.bf16.msra.mxu0 0
      %948 = vmatpush.bf16.msra.mxu0 0
      %949 = vmatpush.bf16.msra.mxu0 0
      %950 = vmatpush.bf16.msra.mxu0 0
      %951 = vmatpush.bf16.msra.mxu0 0
      %952 = vmatpush.bf16.msra.mxu0 %v943
      %953 = vmatmul.bf16.gmra.mxu0 %v940
      %v954 = vpop.f32.mrf.mxu0
      %v955 = vadd.f32 0.0, %v954
      %v956 = vpop.f32.mrf.mxu0
      %957 = vdwg.mxu0
      %v958 = vadd.f32 %v931, %v955
      %959 = vrot.lane.b32.xlu0 %v767, 64
      %v960 = vpop.permute.xlu0 %959
      %961 = vrot.lane.b32.xlu0 %v344, 106
      %v962 = vpop.permute.xlu0 %961
      %963 = vrot.lane.b32.xlu0 %v345, 106
      %v964 = vpop.permute.xlu0 %963
      %vm965 = vcmask 867328
      %v966 = vsel %vm965, %v962, %v964
      %v968 = vsel %vm298, %v960, 0
      %v971 = vsel %vm302, %v966, 0
      %973 = vmatpush.bf16.msra.mxu0 0
      %974 = vmatpush.bf16.msra.mxu0 0
      %975 = vmatpush.bf16.msra.mxu0 0
      %976 = vmatpush.bf16.msra.mxu0 0
      %977 = vmatpush.bf16.msra.mxu0 0
      %978 = vmatpush.bf16.msra.mxu0 0
      %979 = vmatpush.bf16.msra.mxu0 0
      %980 = vmatpush.bf16.msra.mxu0 %v971
      %981 = vmatmul.bf16.gmra.mxu0 %v968
      %v982 = vpop.f32.mrf.mxu0
      %v983 = vadd.f32 0.0, %v982
      %v984 = vpop.f32.mrf.mxu0
      %985 = vdwg.mxu0
      %v986 = vadd.f32 %v958, %v983
      %v987 = vld [vmem:[%s2] sm:$0xff]
      %989 = vset.pattern.permute.xlu0 0
      %990 = vperm.xlu0 %989, %v987
      %v991 = vpop.permute.xlu0 %990
      %v993 = vadd.f32 %v986, %v991
      %v994 = vld [vmem:[%s3] sm:$0x1]
      %v996 = vperm.slane %v994, 0
      %v998 = vmul.f32 %v993, %v996
      %vm999 = vcmask 84992
      %1000 = vst.msk [vmem:[#allocation2] sm:$0xf] %vm999, 0
      %v1001 = vpack.c.bf16 %v998, %v998
      %1003 = vrot.lane.b32.xlu0 %v1001, 11
      %v1004 = vpop.permute.xlu0 %1003
      %v1005 = vrot.slane %v1004, 4
      %vm1006 = vcmask 89088
      %v1007 = vsel %vm1006, %v1005, %v1004
      %vm1009 = vcmask 1043544
      %vm1010 = vcmask 89092
      %vm1011 = vmor %vm1010, %vm1009
      %1012 = vst.msk [vmem:[#allocation2] sm:$0xff] %vm1011, %v1007
      %v1013 = vld [vmem:[%s4] sm:$0xf]
      %v1014 = vld [vmem:[%s4 + $0x4] sm:$0xf]
      %v1015 = vld [vmem:[%s4 + $0x8] sm:$0xf]
      %v1016 = vld [vmem:[#allocation2] sm:$0xf]
      %v1017 = vld [vmem:[#allocation2] sm:$0xff]
      %v1021 = vunpack.c.l.b16 %v1013
      %v1022 = vunpack.c.l.b16 %v1014
      %v1023 = vunpack.c.l.b16 %v1015
      %v1024 = vpack.c.b16 %v1022, %v1021
      %v1025 = vpack.c.b16 %v1023, %v1023
      %1026 = vrot.lane.b32.xlu0 %v1024, 120
      %v1027 = vpop.permute.xlu0 %1026
      %1028 = vrot.lane.b32.xlu0 %v1025, 120
      %v1029 = vpop.permute.xlu0 %1028
      %v1031 = vunpack.c.l.b16 %v1017
      %v1032 = vunpack.c.h.b16 %v1017
      %v1033 = vpack.c.b16 %v1031, %v1031
      %v1034 = vpack.c.b16 %v1032, %v1032
      %1035 = vrot.lane.b32.xlu0 %v1033, 127
      %v1036 = vpop.permute.xlu0 %1035
      %1037 = vrot.lane.b32.xlu0 %v1034, 127
      %v1038 = vpop.permute.xlu0 %1037
      %v1039 = vsel %vm350, %v1036, %v1038
      %v1041 = vsel %vm298, %v1027, 0
      %v1044 = vsel %vm298, %v1029, 0
      %v1047 = vsel %vm302, %v1039, 0
      %1049 = vmatpush.bf16.msra.mxu0 0
      %1050 = vmatpush.bf16.msra.mxu0 0
      %1051 = vmatpush.bf16.msra.mxu0 0
      %1052 = vmatpush.bf16.msra.mxu0 0
      %1053 = vmatpush.bf16.msra.mxu0 0
      %1054 = vmatpush.bf16.msra.mxu0 0
      %1055 = vmatpush.bf16.msra.mxu0 0
      %1056 = vmatpush.bf16.msra.mxu0 %v1047
      %1057 = vmatmul.bf16.gmra.mxu0 %v1041
      %v1058 = vpop.f32.mrf.mxu0
      %v1059 = vadd.f32 0.0, %v1058
      %v1060 = vpop.f32.mrf.mxu0
      %v1061 = vadd.f32 0.0, %v1060
      %1062 = vmatmul.bf16.gmra.mxu0 %v1044
      %v1063 = vpop.f32.mrf.mxu0
      %v1064 = vadd.f32 0.0, %v1063
      %v1065 = vpop.f32.mrf.mxu0
      %1066 = vdwg.mxu0
      %v1068 = vsel %vm298, %v1024, 0
      %v1071 = vsel %vm298, %v1025, 0
      %v1074 = vsel %vm302, %v1016, 0
      %1076 = vmatpush.bf16.msra.mxu0 0
      %1077 = vmatpush.bf16.msra.mxu0 0
      %1078 = vmatpush.bf16.msra.mxu0 0
      %1079 = vmatpush.bf16.msra.mxu0 0
      %1080 = vmatpush.bf16.msra.mxu0 0
      %1081 = vmatpush.bf16.msra.mxu0 0
      %1082 = vmatpush.bf16.msra.mxu0 0
      %1083 = vmatpush.bf16.msra.mxu0 %v1074
      %1084 = vmatmul.bf16.gmra.mxu0 %v1068
      %v1085 = vpop.f32.mrf.mxu0
      %v1086 = vadd.f32 %v1059, %v1085
      %v1087 = vpop.f32.mrf.mxu0
      %v1088 = vadd.f32 %v1061, %v1087
      %1089 = vmatmul.bf16.gmra.mxu0 %v1071
      %v1090 = vpop.f32.mrf.mxu0
      %v1091 = vadd.f32 %v1064, %v1090
      %v1092 = vpop.f32.mrf.mxu0
      %1093 = vdwg.mxu0
      %1094 = vrot.lane.b32.xlu0 %v1024, 112
      %v1095 = vpop.permute.xlu0 %1094
      %1096 = vrot.lane.b32.xlu0 %v1025, 112
      %v1097 = vpop.permute.xlu0 %1096
      %1098 = vrot.lane.b32.xlu0 %v1033, 126
      %v1099 = vpop.permute.xlu0 %1098
      %1100 = vrot.lane.b32.xlu0 %v1034, 126
      %v1101 = vpop.permute.xlu0 %1100
      %v1102 = vsel %vm411, %v1099, %v1101
      %v1104 = vsel %vm298, %v1095, 0
      %v1107 = vsel %vm298, %v1097, 0
      %v1110 = vsel %vm302, %v1102, 0
      %1112 = vmatpush.bf16.msra.mxu0 0
      %1113 = vmatpush.bf16.msra.mxu0 0
      %1114 = vmatpush.bf16.msra.mxu0 0
      %1115 = vmatpush.bf16.msra.mxu0 0
      %1116 = vmatpush.bf16.msra.mxu0 0
      %1117 = vmatpush.bf16.msra.mxu0 0
      %1118 = vmatpush.bf16.msra.mxu0 0
      %1119 = vmatpush.bf16.msra.mxu0 %v1110
      %1120 = vmatmul.bf16.gmra.mxu0 %v1104
      %v1121 = vpop.f32.mrf.mxu0
      %v1122 = vadd.f32 0.0, %v1121
      %v1123 = vpop.f32.mrf.mxu0
      %v1124 = vadd.f32 0.0, %v1123
      %1125 = vmatmul.bf16.gmra.mxu0 %v1107
      %v1126 = vpop.f32.mrf.mxu0
      %v1127 = vadd.f32 0.0, %v1126
      %v1128 = vpop.f32.mrf.mxu0
      %1129 = vdwg.mxu0
      %v1130 = vadd.f32 %v1086, %v1122
      %v1131 = vadd.f32 %v1088, %v1124
      %v1132 = vadd.f32 %v1091, %v1127
      %1133 = vrot.lane.b32.xlu0 %v1024, 104
      %v1134 = vpop.permute.xlu0 %1133
      %1135 = vrot.lane.b32.xlu0 %v1025, 104
      %v1136 = vpop.permute.xlu0 %1135
      %1137 = vrot.lane.b32.xlu0 %v1033, 118
      %v1138 = vpop.permute.xlu0 %1137
      %1139 = vrot.lane.b32.xlu0 %v1034, 118
      %v1140 = vpop.permute.xlu0 %1139
      %v1141 = vsel %vm580, %v1138, %v1140
      %v1143 = vsel %vm298, %v1134, 0
      %v1146 = vsel %vm298, %v1136, 0
      %v1149 = vsel %vm302, %v1141, 0
      %1151 = vmatpush.bf16.msra.mxu0 0
      %1152 = vmatpush.bf16.msra.mxu0 0
      %1153 = vmatpush.bf16.msra.mxu0 0
      %1154 = vmatpush.bf16.msra.mxu0 0
      %1155 = vmatpush.bf16.msra.mxu0 0
      %1156 = vmatpush.bf16.msra.mxu0 0
      %1157 = vmatpush.bf16.msra.mxu0 0
      %1158 = vmatpush.bf16.msra.mxu0 %v1149
      %1159 = vmatmul.bf16.gmra.mxu0 %v1143
      %v1160 = vpop.f32.mrf.mxu0
      %v1161 = vadd.f32 0.0, %v1160
      %v1162 = vpop.f32.mrf.mxu0
      %v1163 = vadd.f32 0.0, %v1162
      %1164 = vmatmul.bf16.gmra.mxu0 %v1146
      %v1165 = vpop.f32.mrf.mxu0
      %v1166 = vadd.f32 0.0, %v1165
      %v1167 = vpop.f32.mrf.mxu0
      %1168 = vdwg.mxu0
      %v1169 = vadd.f32 %v1130, %v1161
      %v1170 = vadd.f32 %v1131, %v1163
      %v1171 = vadd.f32 %v1132, %v1166
      %1172 = vrot.lane.b32.xlu0 %v1024, 96
      %v1173 = vpop.permute.xlu0 %1172
      %1174 = vrot.lane.b32.xlu0 %v1025, 96
      %v1175 = vpop.permute.xlu0 %1174
      %1176 = vrot.lane.b32.xlu0 %v1033, 117
      %v1177 = vpop.permute.xlu0 %1176
      %1178 = vrot.lane.b32.xlu0 %v1034, 117
      %v1179 = vpop.permute.xlu0 %1178
      %v1180 = vsel %vm635, %v1177, %v1179
      %v1182 = vsel %vm298, %v1173, 0
      %v1185 = vsel %vm298, %v1175, 0
      %v1188 = vsel %vm302, %v1180, 0
      %1190 = vmatpush.bf16.msra.mxu0 0
      %1191 = vmatpush.bf16.msra.mxu0 0
      %1192 = vmatpush.bf16.msra.mxu0 0
      %1193 = vmatpush.bf16.msra.mxu0 0
      %1194 = vmatpush.bf16.msra.mxu0 0
      %1195 = vmatpush.bf16.msra.mxu0 0
      %1196 = vmatpush.bf16.msra.mxu0 0
      %1197 = vmatpush.bf16.msra.mxu0 %v1188
      %1198 = vmatmul.bf16.gmra.mxu0 %v1182
      %v1199 = vpop.f32.mrf.mxu0
      %v1200 = vadd.f32 0.0, %v1199
      %v1201 = vpop.f32.mrf.mxu0
      %v1202 = vadd.f32 0.0, %v1201
      %1203 = vmatmul.bf16.gmra.mxu0 %v1185
      %v1204 = vpop.f32.mrf.mxu0
      %v1205 = vadd.f32 0.0, %v1204
      %v1206 = vpop.f32.mrf.mxu0
      %1207 = vdwg.mxu0
      %v1208 = vadd.f32 %v1169, %v1200
      %v1209 = vadd.f32 %v1170, %v1202
      %v1210 = vadd.f32 %v1171, %v1205
      %1211 = vrot.lane.b32.xlu0 %v1024, 88
      %v1212 = vpop.permute.xlu0 %1211
      %1213 = vrot.lane.b32.xlu0 %v1025, 88
      %v1214 = vpop.permute.xlu0 %1213
      %1215 = vrot.lane.b32.xlu0 %v1033, 116
      %v1216 = vpop.permute.xlu0 %1215
      %1217 = vrot.lane.b32.xlu0 %v1034, 116
      %v1218 = vpop.permute.xlu0 %1217
      %v1219 = vsel %vm690, %v1216, %v1218
      %v1221 = vsel %vm298, %v1212, 0
      %v1224 = vsel %vm298, %v1214, 0
      %v1227 = vsel %vm302, %v1219, 0
      %1229 = vmatpush.bf16.msra.mxu0 0
      %1230 = vmatpush.bf16.msra.mxu0 0
      %1231 = vmatpush.bf16.msra.mxu0 0
      %1232 = vmatpush.bf16.msra.mxu0 0
      %1233 = vmatpush.bf16.msra.mxu0 0
      %1234 = vmatpush.bf16.msra.mxu0 0
      %1235 = vmatpush.bf16.msra.mxu0 0
      %1236 = vmatpush.bf16.msra.mxu0 %v1227
      %1237 = vmatmul.bf16.gmra.mxu0 %v1221
      %v1238 = vpop.f32.mrf.mxu0
      %v1239 = vadd.f32 0.0, %v1238
      %v1240 = vpop.f32.mrf.mxu0
      %v1241 = vadd.f32 0.0, %v1240
      %1242 = vmatmul.bf16.gmra.mxu0 %v1224
      %v1243 = vpop.f32.mrf.mxu0
      %v1244 = vadd.f32 0.0, %v1243
      %v1245 = vpop.f32.mrf.mxu0
      %1246 = vdwg.mxu0
      %v1247 = vadd.f32 %v1208, %v1239
      %v1248 = vadd.f32 %v1209, %v1241
      %v1249 = vadd.f32 %v1210, %v1244
      %1250 = vrot.lane.b32.xlu0 %v1024, 80
      %v1251 = vpop.permute.xlu0 %1250
      %1252 = vrot.lane.b32.xlu0 %v1025, 80
      %v1253 = vpop.permute.xlu0 %1252
      %1254 = vrot.lane.b32.xlu0 %v1033, 108
      %v1255 = vpop.permute.xlu0 %1254
      %1256 = vrot.lane.b32.xlu0 %v1034, 108
      %v1257 = vpop.permute.xlu0 %1256
      %v1258 = vsel %vm855, %v1255, %v1257
      %v1260 = vsel %vm298, %v1251, 0
      %v1263 = vsel %vm298, %v1253, 0
      %v1266 = vsel %vm302, %v1258, 0
      %1268 = vmatpush.bf16.msra.mxu0 0
      %1269 = vmatpush.bf16.msra.mxu0 0
      %1270 = vmatpush.bf16.msra.mxu0 0
      %1271 = vmatpush.bf16.msra.mxu0 0
      %1272 = vmatpush.bf16.msra.mxu0 0
      %1273 = vmatpush.bf16.msra.mxu0 0
      %1274 = vmatpush.bf16.msra.mxu0 0
      %1275 = vmatpush.bf16.msra.mxu0 %v1266
      %1276 = vmatmul.bf16.gmra.mxu0 %v1260
      %v1277 = vpop.f32.mrf.mxu0
      %v1278 = vadd.f32 0.0, %v1277
      %v1279 = vpop.f32.mrf.mxu0
      %v1280 = vadd.f32 0.0, %v1279
      %1281 = vmatmul.bf16.gmra.mxu0 %v1263
      %v1282 = vpop.f32.mrf.mxu0
      %v1283 = vadd.f32 0.0, %v1282
      %v1284 = vpop.f32.mrf.mxu0
      %1285 = vdwg.mxu0
      %v1286 = vadd.f32 %v1247, %v1278
      %v1287 = vadd.f32 %v1248, %v1280
      %v1288 = vadd.f32 %v1249, %v1283
      %1289 = vrot.lane.b32.xlu0 %v1024, 72
      %v1290 = vpop.permute.xlu0 %1289
      %1291 = vrot.lane.b32.xlu0 %v1025, 72
      %v1292 = vpop.permute.xlu0 %1291
      %1293 = vrot.lane.b32.xlu0 %v1033, 107
      %v1294 = vpop.permute.xlu0 %1293
      %1295 = vrot.lane.b32.xlu0 %v1034, 107
      %v1296 = vpop.permute.xlu0 %1295
      %v1297 = vsel %vm910, %v1294, %v1296
      %v1299 = vsel %vm298, %v1290, 0
      %v1302 = vsel %vm298, %v1292, 0
      %v1305 = vsel %vm302, %v1297, 0
      %1307 = vmatpush.bf16.msra.mxu0 0
      %1308 = vmatpush.bf16.msra.mxu0 0
      %1309 = vmatpush.bf16.msra.mxu0 0
      %1310 = vmatpush.bf16.msra.mxu0 0
      %1311 = vmatpush.bf16.msra.mxu0 0
      %1312 = vmatpush.bf16.msra.mxu0 0
      %1313 = vmatpush.bf16.msra.mxu0 0
      %1314 = vmatpush.bf16.msra.mxu0 %v1305
      %1315 = vmatmul.bf16.gmra.mxu0 %v1299
      %v1316 = vpop.f32.mrf.mxu0
      %v1317 = vadd.f32 0.0, %v1316
      %v1318 = vpop.f32.mrf.mxu0
      %v1319 = vadd.f32 0.0, %v1318
      %1320 = vmatmul.bf16.gmra.mxu0 %v1302
      %v1321 = vpop.f32.mrf.mxu0
      %v1322 = vadd.f32 0.0, %v1321
      %v1323 = vpop.f32.mrf.mxu0
      %1324 = vdwg.mxu0
      %v1325 = vadd.f32 %v1286, %v1317
      %v1326 = vadd.f32 %v1287, %v1319
      %v1327 = vadd.f32 %v1288, %v1322
      %1328 = vrot.lane.b32.xlu0 %v1024, 64
      %v1329 = vpop.permute.xlu0 %1328
      %1330 = vrot.lane.b32.xlu0 %v1025, 64
      %v1331 = vpop.permute.xlu0 %1330
      %1332 = vrot.lane.b32.xlu0 %v1033, 106
      %v1333 = vpop.permute.xlu0 %1332
      %1334 = vrot.lane.b32.xlu0 %v1034, 106
      %v1335 = vpop.permute.xlu0 %1334
      %v1336 = vsel %vm965, %v1333, %v1335
      %v1338 = vsel %vm298, %v1329, 0
      %v1341 = vsel %vm298, %v1331, 0
      %v1344 = vsel %vm302, %v1336, 0
      %1346 = vmatpush.bf16.msra.mxu0 0
      %1347 = vmatpush.bf16.msra.mxu0 0
      %1348 = vmatpush.bf16.msra.mxu0 0
      %1349 = vmatpush.bf16.msra.mxu0 0
      %1350 = vmatpush.bf16.msra.mxu0 0
      %1351 = vmatpush.bf16.msra.mxu0 0
      %1352 = vmatpush.bf16.msra.mxu0 0
      %1353 = vmatpush.bf16.msra.mxu0 %v1344
      %1354 = vmatmul.bf16.gmra.mxu0 %v1338
      %v1355 = vpop.f32.mrf.mxu0
      %v1356 = vadd.f32 0.0, %v1355
      %v1357 = vpop.f32.mrf.mxu0
      %v1358 = vadd.f32 0.0, %v1357
      %1359 = vmatmul.bf16.gmra.mxu0 %v1341
      %v1360 = vpop.f32.mrf.mxu0
      %v1361 = vadd.f32 0.0, %v1360
      %v1362 = vpop.f32.mrf.mxu0
      %1363 = vdwg.mxu0
      %v1364 = vadd.f32 %v1325, %v1356
      %v1365 = vadd.f32 %v1326, %v1358
      %v1366 = vadd.f32 %v1327, %v1361
      %v1367 = vld [vmem:[%s5] sm:$0xff]
      %v1368 = vld [vmem:[%s5 + $0x8] sm:$0xff]
      %v1369 = vld [vmem:[%s5 + $0x10] sm:$0xff]
      %1371 = vset.pattern.permute.xlu0 0
      %1372 = vperm.xlu0 %1371, %v1367
      %v1373 = vpop.permute.xlu0 %1372
      %1376 = vset.pattern.permute.xlu0 0
      %1377 = vperm.xlu0 %1376, %v1368
      %v1378 = vpop.permute.xlu0 %1377
      %1381 = vset.pattern.permute.xlu0 0
      %1382 = vperm.xlu0 %1381, %v1369
      %v1383 = vpop.permute.xlu0 %1382
      %v1385 = vadd.f32 %v1364, %v1373
      %v1386 = vadd.f32 %v1365, %v1378
      %v1387 = vadd.f32 %v1366, %v1383
      %v1388 = vmul.f32 %v1385, 0.5
      %v1389 = vtanh.pop %v1388
      %v1390 = vadd.f32 %v1389, 1.0
      %v1391 = vmul.f32 %v1390, 0.5
      %v1392 = vmul.f32 %v1386, 0.5
      %v1393 = vtanh.pop %v1392
      %v1394 = vadd.f32 %v1393, 1.0
      %v1395 = vmul.f32 %v1394, 0.5
      %v1396 = vtanh.pop %v1387
      %v1397 = vmul.f32 %v1391, %v1396
      %v1398 = vtanh.pop %v1397
      %v1399 = vmul.f32 %v1395, %v1398
      %1400 = vst [vmem:[%s287] sm:$0xff] %v1397
      %1401 = vst [vmem:[%s283] sm:$0xff] %v1399
      %p1402 = scmp.lt.s32.totalorder %s19, 1
      %s1403 = scalar_select %p1402, %s19, 1
      %s1404 = smul.addr %s1403, 8
      %s1405 = scalar_lea.vmem %s6, %s1404
      %p1406 = scmp.lt.s32.totalorder %s19, 1
      %s1407 = scalar_select %p1406, %s19, 1
      %s1408 = smul.addr %s1407, 8
      %s1409 = scalar_lea.vmem %s7, %s1408
      // Predicated region
      $region45: #{encoder_layer_forward.1} parent=43 // pred_check
        %p1410 = pneg %p168
      $region46: #{encoder_layer_forward.1} parent=43 // pred_check_branch
        %1412 = sbr.rel (%p1410) target = $region48
      $region47: #{encoder_layer_forward.1} parent=43 // pred_region
        _
      $region48: #{encoder_layer_forward.1} parent=43 // pred_fallthru
        _
      // Predicated region
      $region49: #{encoder_layer_forward.1} parent=43 // pred_check
        %p1413 = pneg %p194
      $region50: #{encoder_layer_forward.1} parent=43 // pred_check_branch
        %1415 = sbr.rel (%p1413) target = $region52
      $region51: #{encoder_layer_forward.1} parent=43 // pred_region
        _
      $region52: #{encoder_layer_forward.1} parent=43 // pred_fallthru
        _
    $region44: #{encoder_layer_forward.1} parent=5 // pred_fallthru
      _
    %p1416 = scmp.le.s32.totalorder 2, %s14
    // Predicated region
    $region53: #{encoder_layer_forward.1} parent=5 // pred_check
      %p1417 = pneg %p1416
    $region54: #{encoder_layer_forward.1} parent=5 // pred_check_branch
      %1419 = sbr.rel (%p1417) target = $region56
    $region55: #{encoder_layer_forward.1} parent=5 // pred_region
      %s1420 = ssub.s32 %s14, 2
      // Predicated region
      $region57: #{encoder_layer_forward.1} parent=55 // pred_check
        %p1421 = pneg %p174
      $region58: #{encoder_layer_forward.1} parent=55 // pred_check_branch
        %1423 = sbr.rel (%p1421) target = $region60
      $region59: #{encoder_layer_forward.1} parent=55 // pred_region
        %p1424 = scmp.lt.s32.totalorder %s20, 1
        %s1425 = scalar_select %p1424, %s20, 1
        %s1426 = smul.addr %s1425, 8
        %s1427 = scalar_lea.vmem %s6, %s1426
      $region60: #{encoder_layer_forward.1} parent=55 // pred_fallthru
        _
      // Predicated region
      $region61: #{encoder_layer_forward.1} parent=55 // pred_check
        %p1428 = pneg %p200
      $region62: #{encoder_layer_forward.1} parent=55 // pred_check_branch
        %1430 = sbr.rel (%p1428) target = $region64
      $region63: #{encoder_layer_forward.1} parent=55 // pred_region
        %p1431 = scmp.lt.s32.totalorder %s20, 1
        %s1432 = scalar_select %p1431, %s20, 1
        %s1433 = smul.addr %s1432, 8
        %s1434 = scalar_lea.vmem %s7, %s1433
      $region64: #{encoder_layer_forward.1} parent=55 // pred_fallthru
        _
    $region56: #{encoder_layer_forward.1} parent=5 // pred_fallthru
      _
  $region6: #{encoder_layer_forward.1} parent=0 // loop_footer
    %s18 = sadd.s32 1, %s14
  $region7: #{encoder_layer_forward.1} parent=0 // loop_footer_branch
    %13 = sbr.rel target = $region3
  $region8: #{encoder_layer_forward.1} parent=0 // loop_exit
    _

</llo_original>
